<compile_context>
chip_gen: v7x
topology: tpu7x:2x2x1
jax: 0.10.0
libtpu: 0.0.40
codegen_flags: <defaults>
</compile_context>

<pallas_src>
import functools

import jax
import jax.numpy as jnp
from jax.experimental import pallas as pl
from jax.experimental.pallas import tpu as pltpu


# ----------------------- Pallas kernel -----------------------

def _fusion_kernel(mm_dtype,
                   x0_ref, x1_ref, mup_ref, mdn_ref,
                   w1a_ref, b1a_ref, w1b_ref, b1b_ref,
                   w2a_ref, b2a_ref, w2b_ref, b2b_ref,
                   wo_ref, bo_ref,
                   out_ref):
    """One batch-block per grid step; activations are (R, W*C) f32 values."""
    f32 = jnp.float32
    R = x0_ref.shape[0]
    mup = mup_ref[...]   # (R, 1) 0/1 mask: zero where the row is an image top
    mdn = mdn_ref[...]   # (R, 1) 0/1 mask: zero where the row is an image bottom

    def conv3x3(t, w_ref, b_ref):
        # t: (R, W*C) f32, post-ReLU.  Vertical shift via XLU roll + boundary
        # mask (no R^2 matmul); all three kh taps fused into a single MXU
        # matmul with K = 3*WC.  One cast to mm_dtype per conv.
        up = pltpu.roll(t, shift=1, axis=0) * mup        # row h <- h-1 (zero halo)
        dn = pltpu.roll(t, shift=R - 1, axis=0) * mdn    # row h <- h+1 (zero halo)
        k_op = jnp.concatenate([up, t, dn], axis=1).astype(mm_dtype)  # (R, 3*WC)
        acc = jnp.dot(k_op, w_ref[...], preferred_element_type=f32)
        return acc + b_ref[...]

    def resblock(x, wa_ref, ba_ref, wb_ref, bb_ref):
        t = conv3x3(jnp.maximum(x, 0.0), wa_ref, ba_ref)
        t = conv3x3(jnp.maximum(t, 0.0), wb_ref, bb_ref)
        return x + t

    x0 = x0_ref[...].astype(f32)
    x1 = x1_ref[...].astype(f32)

    # resnet1 on x1, then skip add.
    x = x0 + resblock(x1, w1a_ref, b1a_ref, w1b_ref, b1b_ref)
    # resnet2.
    x = resblock(x, w2a_ref, b2a_ref, w2b_ref, b2b_ref)
    # out_conv: 1x1 conv == block-diagonal matmul over the (W*C) lane axis.
    y = jnp.dot(x.astype(mm_dtype), wo_ref[...],
                preferred_element_type=f32) + bo_ref[...]
    out_ref[...] = y.astype(out_ref.dtype)


# ----------------------- wrapper -----------------------

def feature_fusion_block(x0, x1, params, *, block_n=None, bf16_matmul=True):
    """x0, x1: (N, H, W, C) float32. params: HWIO-layout weights (see driver)."""
    N, H, W, C = x0.shape
    WC = W * C
    # Lane-dense unmasked stores require a full 128-lane multiple.
    assert WC % 128 == 0, "W*C must be a multiple of 128 (pad channels/width)"

    if block_n is None:
        # Prefer >=2 grid steps (pipelining on all chips, megacore on v7x)
        # with R = block_n*H roughly in the 128-512 row sweet spot.
        divisors = [d for d in range(1, N + 1) if N % d == 0]
        multi_step = [d for d in divisors if N // d >= 2]
        cands = multi_step if multi_step else divisors

        def score(d):
            r = d * H
            return (0 if 128 <= r <= 512 else 1, abs(r - 256))

        block_n = min(cands, key=score)

    assert N % block_n == 0, "batch must be divisible by block_n"
    R = block_n * H
    assert R % 8 == 0, "block rows must be a multiple of 8 (sublane tiling)"
    mm_dtype = jnp.bfloat16 if bf16_matmul else jnp.float32

    # Lane-dense layout: (N, H, W, C) -> (N*H, W*C); lane index = w*C + c.
    x0r = x0.reshape(N * H, WC)
    x1r = x1.reshape(N * H, WC)

    # (R, 1) boundary masks: zero the rolled-in row at image top / bottom
    # (SAME padding in H and no leakage between images inside a batch block).
    r = jnp.arange(R)
    mask_up = (r % H != 0).astype(jnp.float32).reshape(R, 1)
    mask_dn = (r % H != H - 1).astype(jnp.float32).reshape(R, 1)

    def banded_fused(w):
        # (3, 3, Ci, Co) HWIO -> (3*WC, WC): rows [kh*WC:(kh+1)*WC] hold the
        # width-banded (block-tridiagonal over w) tap for vertical offset kh-1,
        # acting on the (w, ci) lane axis.  All three taps stacked along K so
        # the conv is a single MXU matmul.
        # TODO(synk): density is 3/W; switch to per-band strip matmuls at
        # production widths instead of growing the dense kron.
        taps = []
        for kh in range(3):
            b = sum(jnp.kron(jnp.eye(W, k=1 - kw, dtype=jnp.float32),
                             w[kh, kw].astype(jnp.float32))
                    for kw in range(3))
            taps.append(b)
        return jnp.concatenate(taps, axis=0).astype(mm_dtype)

    def widen_bias(b):
        return jnp.tile(b.astype(jnp.float32), W).reshape(1, WC)

    w1a, b1a = banded_fused(params["w1a"]), widen_bias(params["b1a"])
    w1b, b1b = banded_fused(params["w1b"]), widen_bias(params["b1b"])
    w2a, b2a = banded_fused(params["w2a"]), widen_bias(params["b2a"])
    w2b, b2b = banded_fused(params["w2b"]), widen_bias(params["b2b"])
    wo = jnp.kron(jnp.eye(W, dtype=jnp.float32),
                  params["wo"].astype(jnp.float32)).astype(mm_dtype)
    bo = widen_bias(params["bo"])

    def const_spec(shape):
        return pl.BlockSpec(shape, lambda n: (0,) * len(shape))

    row_spec = pl.BlockSpec((R, WC), lambda n: (n, 0))

    # Explicit VMEM budget (v7x only has 64 MiB physical / 32 MiB scoped).
    mm_itemsize = 2 if bf16_matmul else 4
    const_bytes = 13 * WC * WC * mm_itemsize + 5 * WC * 4 + 2 * R * 128 * 4
    slab_bytes = 3 * R * WC * 4                      # x0, x1, out blocks
    tmp_bytes = 10 * R * 3 * WC * 4                  # live f32 temporaries
    est = 2 * (const_bytes + slab_bytes) + tmp_bytes  # double-buffered I/O
    vmem_limit = int(min(max(4 * est, 32 * 2 ** 20), 64 * 2 ** 20))

    kernel = functools.partial(_fusion_kernel, mm_dtype)

    out = pl.pallas_call(
        kernel,
        out_shape=jax.ShapeDtypeStruct((N * H, WC), x0.dtype),
        grid_spec=pltpu.PrefetchScalarGridSpec(
            num_scalar_prefetch=0,
            grid=(N // block_n,),
            in_specs=[
                row_spec,                                      # x0
                row_spec,                                      # x1
                const_spec((R, 1)), const_spec((R, 1)),        # boundary masks
                const_spec((3 * WC, WC)), const_spec((1, WC)),  # resnet1 conv a
                const_spec((3 * WC, WC)), const_spec((1, WC)),  # resnet1 conv b
                const_spec((3 * WC, WC)), const_spec((1, WC)),  # resnet2 conv a
                const_spec((3 * WC, WC)), const_spec((1, WC)),  # resnet2 conv b
                const_spec((WC, WC)), const_spec((1, WC)),      # out_conv + bias
            ],
            out_specs=row_spec,
        ),
        compiler_params=pltpu.CompilerParams(
            dimension_semantics=("parallel",),
            vmem_limit_bytes=vmem_limit),
    )(x0r, x1r, mask_up, mask_dn,
      w1a, b1a, w1b, b1b, w2a, b2a, w2b, b2b, wo, bo)

    return out.reshape(N, H, W, C)


# ----------------------- pure-JAX reference -----------------------

def _conv3x3_ref(x, w, b):
    y = jax.lax.conv_general_dilated(
        x, w, window_strides=(1, 1), padding="SAME",
        dimension_numbers=("NHWC", "HWIO", "NHWC"))
    return y + b.reshape(1, 1, 1, -1)


def _ref_forward(x0, x1, p):
    def resblock(x, wa, ba, wb, bb):
        t = jax.nn.relu(x)
        t = _conv3x3_ref(t, wa, ba)
        t = jax.nn.relu(t)
        t = _conv3x3_ref(t, wb, bb)
        return x + t

    x = x0 + resblock(x1, p["w1a"], p["b1a"], p["w1b"], p["b1b"])
    x = resblock(x, p["w2a"], p["b2a"], p["w2b"], p["b2b"])
    y = jnp.einsum("nhwc,cd->nhwd", x, p["wo"]) + p["bo"].reshape(1, 1, 1, -1)
    return y


# ----------------------- driver -----------------------

if __name__ == "__main__":
    N, H, W, C = 2, 16, 16, 8   # features = 8; W*C = 128 (lane-dense)

    key = jax.random.PRNGKey(0)
    keys = jax.random.split(key, 12)

    x0 = jax.random.normal(keys[0], (N, H, W, C), jnp.float32)
    x1 = jax.random.normal(keys[1], (N, H, W, C), jnp.float32)

    s = 0.1
    params = {
        "w1a": s * jax.random.normal(keys[2], (3, 3, C, C), jnp.float32),
        "b1a": s * jax.random.normal(keys[3], (C,), jnp.float32),
        "w1b": s * jax.random.normal(keys[4], (3, 3, C, C), jnp.float32),
        "b1b": s * jax.random.normal(keys[5], (C,), jnp.float32),
        "w2a": s * jax.random.normal(keys[6], (3, 3, C, C), jnp.float32),
        "b2a": s * jax.random.normal(keys[7], (C,), jnp.float32),
        "w2b": s * jax.random.normal(keys[8], (3, 3, C, C), jnp.float32),
        "b2b": s * jax.random.normal(keys[9], (C,), jnp.float32),
        "wo":  s * jax.random.normal(keys[10], (C, C), jnp.float32),
        "bo":  s * jax.random.normal(keys[11], (C,), jnp.float32),
    }

    ref = _ref_forward(x0, x1, params)

    # Default path: bf16 MXU operands, f32 accumulation -> relaxed tolerance.
    out_bf16 = feature_fusion_block(x0, x1, params)
    out_bf16 = jax.block_until_ready(out_bf16)
    assert out_bf16.shape == (N, H, W, C)
    assert jnp.allclose(out_bf16, ref, atol=5e-2, rtol=5e-2), (
        float(jnp.max(jnp.abs(out_bf16 - ref))))

    # Debug path: f32 MXU operands -> tight tolerance.
    out_f32 = feature_fusion_block(x0, x1, params, bf16_matmul=False)
    out_f32 = jax.block_until_ready(out_f32)
    assert jnp.allclose(out_f32, ref, atol=1e-4, rtol=1e-4), (
        float(jnp.max(jnp.abs(out_f32 - ref))))

    print("KERNEL_OK")
</pallas_src>

<mosaic_0001>
module attributes {stable_mosaic.version = 11 : i64} {
  func.func @_fusion_kernel(%arg0: i32, %arg1: memref<16x128xf32, #tpu.memory_space<vmem>>, %arg2: memref<16x128xf32, #tpu.memory_space<vmem>>, %arg3: memref<16x1xf32, #tpu.memory_space<vmem>>, %arg4: memref<16x1xf32, #tpu.memory_space<vmem>>, %arg5: memref<384x128xbf16, #tpu.memory_space<vmem>>, %arg6: memref<1x128xf32, #tpu.memory_space<vmem>>, %arg7: memref<384x128xbf16, #tpu.memory_space<vmem>>, %arg8: memref<1x128xf32, #tpu.memory_space<vmem>>, %arg9: memref<384x128xbf16, #tpu.memory_space<vmem>>, %arg10: memref<1x128xf32, #tpu.memory_space<vmem>>, %arg11: memref<384x128xbf16, #tpu.memory_space<vmem>>, %arg12: memref<1x128xf32, #tpu.memory_space<vmem>>, %arg13: memref<128x128xbf16, #tpu.memory_space<vmem>>, %arg14: memref<1x128xf32, #tpu.memory_space<vmem>>, %arg15: memref<16x128xf32, #tpu.memory_space<vmem>>) attributes {dimension_semantics = [#tpu.dimension_semantics<parallel>], iteration_bounds = array<i64: 2>, scalar_prefetch = 0 : i64, scratch_operands = 0 : i64, tpu.core_type = #tpu.core_type<tc>, window_params = [{transform_indices = @transform_0, window_bounds = array<i64: 16, 128>}, {transform_indices = @transform_1, window_bounds = array<i64: 16, 128>}, {pipeline_mode = #tpu.pipeline_mode<synchronous>, transform_indices = @transform_2, window_bounds = array<i64: 16, 1>}, {pipeline_mode = #tpu.pipeline_mode<synchronous>, transform_indices = @transform_3, window_bounds = array<i64: 16, 1>}, {pipeline_mode = #tpu.pipeline_mode<synchronous>, transform_indices = @transform_4, window_bounds = array<i64: 384, 128>}, {pipeline_mode = #tpu.pipeline_mode<synchronous>, transform_indices = @transform_5, window_bounds = array<i64: 1, 128>}, {pipeline_mode = #tpu.pipeline_mode<synchronous>, transform_indices = @transform_6, window_bounds = array<i64: 384, 128>}, {pipeline_mode = #tpu.pipeline_mode<synchronous>, transform_indices = @transform_7, window_bounds = array<i64: 1, 128>}, {pipeline_mode = #tpu.pipeline_mode<synchronous>, transform_indices = @transform_8, window_bounds = array<i64: 384, 128>}, {pipeline_mode = #tpu.pipeline_mode<synchronous>, transform_indices = @transform_9, window_bounds = array<i64: 1, 128>}, {pipeline_mode = #tpu.pipeline_mode<synchronous>, transform_indices = @transform_10, window_bounds = array<i64: 384, 128>}, {pipeline_mode = #tpu.pipeline_mode<synchronous>, transform_indices = @transform_11, window_bounds = array<i64: 1, 128>}, {pipeline_mode = #tpu.pipeline_mode<synchronous>, transform_indices = @transform_12, window_bounds = array<i64: 128, 128>}, {pipeline_mode = #tpu.pipeline_mode<synchronous>, transform_indices = @transform_13, window_bounds = array<i64: 1, 128>}, {transform_indices = @transform_14, window_bounds = array<i64: 16, 128>}]} {
    %c0 = arith.constant 0 : index
    %c0_0 = arith.constant 0 : index
    %0 = vector.load %arg3[%c0, %c0_0] : memref<16x1xf32, #tpu.memory_space<vmem>>, vector<16x1xf32>
    %c0_1 = arith.constant 0 : index
    %c0_2 = arith.constant 0 : index
    %1 = vector.load %arg4[%c0_1, %c0_2] : memref<16x1xf32, #tpu.memory_space<vmem>>, vector<16x1xf32>
    %c0_3 = arith.constant 0 : index
    %c0_4 = arith.constant 0 : index
    %2 = vector.load %arg1[%c0_3, %c0_4] : memref<16x128xf32, #tpu.memory_space<vmem>>, vector<16x128xf32>
    %c0_5 = arith.constant 0 : index
    %c0_6 = arith.constant 0 : index
    %3 = vector.load %arg2[%c0_5, %c0_6] : memref<16x128xf32, #tpu.memory_space<vmem>>, vector<16x128xf32>
    %cst = arith.constant 0.000000e+00 : f32
    %4 = vector.broadcast %cst : f32 to vector<16x128xf32>
    %5 = arith.maximumf %3, %4 : vector<16x128xf32>
    %c1_i32 = arith.constant 1 : i32
    %6 = tpu.dynamic_rotate %5 by %c1_i32 dim 0 : vector<16x128xf32>, i32 -> vector<16x128xf32>
    %7 = vector.broadcast %0 : vector<16x1xf32> to vector<16x128xf32>
    %8 = arith.mulf %6, %7 : vector<16x128xf32>
    %c15_i32 = arith.constant 15 : i32
    %9 = tpu.dynamic_rotate %5 by %c15_i32 dim 0 : vector<16x128xf32>, i32 -> vector<16x128xf32>
    %10 = vector.broadcast %1 : vector<16x1xf32> to vector<16x128xf32>
    %11 = arith.mulf %9, %10 : vector<16x128xf32>
    %12 = tpu.concatenate %8, %5, %11 in 1 : vector<16x128xf32>, vector<16x128xf32>, vector<16x128xf32> -> vector<16x384xf32>
    %13 = arith.truncf %12 : vector<16x384xf32> to vector<16x384xbf16>
    %c0_7 = arith.constant 0 : index
    %c0_8 = arith.constant 0 : index
    %14 = vector.load %arg5[%c0_7, %c0_8] : memref<384x128xbf16, #tpu.memory_space<vmem>>, vector<384x128xbf16>
    %cst_9 = arith.constant dense<0.000000e+00> : vector<16x128xf32>
    %15 = tpu.matmul %13, %14, %cst_9 {dimension_numbers = #tpu.dot_dimension_numbers<[1], [0], [0], [1], [0, 0, 1, 1], [], []>} : vector<16x384xbf16>, vector<384x128xbf16>, vector<16x128xf32> -> vector<16x128xf32>
    %c0_10 = arith.constant 0 : index
    %c0_11 = arith.constant 0 : index
    %16 = vector.load %arg6[%c0_10, %c0_11] : memref<1x128xf32, #tpu.memory_space<vmem>>, vector<1x128xf32>
    %17 = vector.broadcast %16 : vector<1x128xf32> to vector<16x128xf32>
    %18 = arith.addf %15, %17 : vector<16x128xf32>
    %cst_12 = arith.constant 0.000000e+00 : f32
    %19 = vector.broadcast %cst_12 : f32 to vector<16x128xf32>
    %20 = arith.maximumf %18, %19 : vector<16x128xf32>
    %c1_i32_13 = arith.constant 1 : i32
    %21 = tpu.dynamic_rotate %20 by %c1_i32_13 dim 0 : vector<16x128xf32>, i32 -> vector<16x128xf32>
    %22 = vector.broadcast %0 : vector<16x1xf32> to vector<16x128xf32>
    %23 = arith.mulf %21, %22 : vector<16x128xf32>
    %c15_i32_14 = arith.constant 15 : i32
    %24 = tpu.dynamic_rotate %20 by %c15_i32_14 dim 0 : vector<16x128xf32>, i32 -> vector<16x128xf32>
    %25 = vector.broadcast %1 : vector<16x1xf32> to vector<16x128xf32>
    %26 = arith.mulf %24, %25 : vector<16x128xf32>
    %27 = tpu.concatenate %23, %20, %26 in 1 : vector<16x128xf32>, vector<16x128xf32>, vector<16x128xf32> -> vector<16x384xf32>
    %28 = arith.truncf %27 : vector<16x384xf32> to vector<16x384xbf16>
    %c0_15 = arith.constant 0 : index
    %c0_16 = arith.constant 0 : index
    %29 = vector.load %arg7[%c0_15, %c0_16] : memref<384x128xbf16, #tpu.memory_space<vmem>>, vector<384x128xbf16>
    %cst_17 = arith.constant dense<0.000000e+00> : vector<16x128xf32>
    %30 = tpu.matmul %28, %29, %cst_17 {dimension_numbers = #tpu.dot_dimension_numbers<[1], [0], [0], [1], [0, 0, 1, 1], [], []>} : vector<16x384xbf16>, vector<384x128xbf16>, vector<16x128xf32> -> vector<16x128xf32>
    %c0_18 = arith.constant 0 : index
    %c0_19 = arith.constant 0 : index
    %31 = vector.load %arg8[%c0_18, %c0_19] : memref<1x128xf32, #tpu.memory_space<vmem>>, vector<1x128xf32>
    %32 = vector.broadcast %31 : vector<1x128xf32> to vector<16x128xf32>
    %33 = arith.addf %30, %32 : vector<16x128xf32>
    %34 = arith.addf %3, %33 : vector<16x128xf32>
    %35 = arith.addf %2, %34 : vector<16x128xf32>
    %cst_20 = arith.constant 0.000000e+00 : f32
    %36 = vector.broadcast %cst_20 : f32 to vector<16x128xf32>
    %37 = arith.maximumf %35, %36 : vector<16x128xf32>
    %c1_i32_21 = arith.constant 1 : i32
    %38 = tpu.dynamic_rotate %37 by %c1_i32_21 dim 0 : vector<16x128xf32>, i32 -> vector<16x128xf32>
    %39 = vector.broadcast %0 : vector<16x1xf32> to vector<16x128xf32>
    %40 = arith.mulf %38, %39 : vector<16x128xf32>
    %c15_i32_22 = arith.constant 15 : i32
    %41 = tpu.dynamic_rotate %37 by %c15_i32_22 dim 0 : vector<16x128xf32>, i32 -> vector<16x128xf32>
    %42 = vector.broadcast %1 : vector<16x1xf32> to vector<16x128xf32>
    %43 = arith.mulf %41, %42 : vector<16x128xf32>
    %44 = tpu.concatenate %40, %37, %43 in 1 : vector<16x128xf32>, vector<16x128xf32>, vector<16x128xf32> -> vector<16x384xf32>
    %45 = arith.truncf %44 : vector<16x384xf32> to vector<16x384xbf16>
    %c0_23 = arith.constant 0 : index
    %c0_24 = arith.constant 0 : index
    %46 = vector.load %arg9[%c0_23, %c0_24] : memref<384x128xbf16, #tpu.memory_space<vmem>>, vector<384x128xbf16>
    %cst_25 = arith.constant dense<0.000000e+00> : vector<16x128xf32>
    %47 = tpu.matmul %45, %46, %cst_25 {dimension_numbers = #tpu.dot_dimension_numbers<[1], [0], [0], [1], [0, 0, 1, 1], [], []>} : vector<16x384xbf16>, vector<384x128xbf16>, vector<16x128xf32> -> vector<16x128xf32>
    %c0_26 = arith.constant 0 : index
    %c0_27 = arith.constant 0 : index
    %48 = vector.load %arg10[%c0_26, %c0_27] : memref<1x128xf32, #tpu.memory_space<vmem>>, vector<1x128xf32>
    %49 = vector.broadcast %48 : vector<1x128xf32> to vector<16x128xf32>
    %50 = arith.addf %47, %49 : vector<16x128xf32>
    %cst_28 = arith.constant 0.000000e+00 : f32
    %51 = vector.broadcast %cst_28 : f32 to vector<16x128xf32>
    %52 = arith.maximumf %50, %51 : vector<16x128xf32>
    %c1_i32_29 = arith.constant 1 : i32
    %53 = tpu.dynamic_rotate %52 by %c1_i32_29 dim 0 : vector<16x128xf32>, i32 -> vector<16x128xf32>
    %54 = vector.broadcast %0 : vector<16x1xf32> to vector<16x128xf32>
    %55 = arith.mulf %53, %54 : vector<16x128xf32>
    %c15_i32_30 = arith.constant 15 : i32
    %56 = tpu.dynamic_rotate %52 by %c15_i32_30 dim 0 : vector<16x128xf32>, i32 -> vector<16x128xf32>
    %57 = vector.broadcast %1 : vector<16x1xf32> to vector<16x128xf32>
    %58 = arith.mulf %56, %57 : vector<16x128xf32>
    %59 = tpu.concatenate %55, %52, %58 in 1 : vector<16x128xf32>, vector<16x128xf32>, vector<16x128xf32> -> vector<16x384xf32>
    %60 = arith.truncf %59 : vector<16x384xf32> to vector<16x384xbf16>
    %c0_31 = arith.constant 0 : index
    %c0_32 = arith.constant 0 : index
    %61 = vector.load %arg11[%c0_31, %c0_32] : memref<384x128xbf16, #tpu.memory_space<vmem>>, vector<384x128xbf16>
    %cst_33 = arith.constant dense<0.000000e+00> : vector<16x128xf32>
    %62 = tpu.matmul %60, %61, %cst_33 {dimension_numbers = #tpu.dot_dimension_numbers<[1], [0], [0], [1], [0, 0, 1, 1], [], []>} : vector<16x384xbf16>, vector<384x128xbf16>, vector<16x128xf32> -> vector<16x128xf32>
    %c0_34 = arith.constant 0 : index
    %c0_35 = arith.constant 0 : index
    %63 = vector.load %arg12[%c0_34, %c0_35] : memref<1x128xf32, #tpu.memory_space<vmem>>, vector<1x128xf32>
    %64 = vector.broadcast %63 : vector<1x128xf32> to vector<16x128xf32>
    %65 = arith.addf %62, %64 : vector<16x128xf32>
    %66 = arith.addf %35, %65 : vector<16x128xf32>
    %67 = arith.truncf %66 : vector<16x128xf32> to vector<16x128xbf16>
    %c0_36 = arith.constant 0 : index
    %c0_37 = arith.constant 0 : index
    %68 = vector.load %arg13[%c0_36, %c0_37] : memref<128x128xbf16, #tpu.memory_space<vmem>>, vector<128x128xbf16>
    %cst_38 = arith.constant dense<0.000000e+00> : vector<16x128xf32>
    %69 = tpu.matmul %67, %68, %cst_38 {dimension_numbers = #tpu.dot_dimension_numbers<[1], [0], [0], [1], [0, 0, 1, 1], [], []>} : vector<16x128xbf16>, vector<128x128xbf16>, vector<16x128xf32> -> vector<16x128xf32>
    %c0_39 = arith.constant 0 : index
    %c0_40 = arith.constant 0 : index
    %70 = vector.load %arg14[%c0_39, %c0_40] : memref<1x128xf32, #tpu.memory_space<vmem>>, vector<1x128xf32>
    %71 = vector.broadcast %70 : vector<1x128xf32> to vector<16x128xf32>
    %72 = arith.addf %69, %71 : vector<16x128xf32>
    %c0_41 = arith.constant 0 : index
    %c0_42 = arith.constant 0 : index
    %73 = vector.load %arg15[%c0_41, %c0_42] : memref<16x128xf32, #tpu.memory_space<vmem>>, vector<16x128xf32>
    tpu.vector_store %arg15[%c0_41, %c0_42], %72 {strides = array<i32>} : memref<16x128xf32, #tpu.memory_space<vmem>>, vector<16x128xf32>,
    return
  }
  func.func @transform_0(%arg0: i32) -> (i32, i32) {
    %c0_i32 = arith.constant 0 : i32
    %c0_i32_0 = arith.constant 0 : i32
    return %arg0, %c0_i32 : i32, i32
  }
  func.func @transform_1(%arg0: i32) -> (i32, i32) {
    %c0_i32 = arith.constant 0 : i32
    %c0_i32_0 = arith.constant 0 : i32
    return %arg0, %c0_i32 : i32, i32
  }
  func.func @transform_2(%arg0: i32) -> (i32, i32) {
    %c0_i32 = arith.constant 0 : i32
    %c0_i32_0 = arith.constant 0 : i32
    %c0_i32_1 = arith.constant 0 : i32
    return %c0_i32, %c0_i32_0 : i32, i32
  }
  func.func @transform_3(%arg0: i32) -> (i32, i32) {
    %c0_i32 = arith.constant 0 : i32
    %c0_i32_0 = arith.constant 0 : i32
    %c0_i32_1 = arith.constant 0 : i32
    return %c0_i32, %c0_i32_0 : i32, i32
  }
  func.func @transform_4(%arg0: i32) -> (i32, i32) {
    %c0_i32 = arith.constant 0 : i32
    %c0_i32_0 = arith.constant 0 : i32
    %c0_i32_1 = arith.constant 0 : i32
    return %c0_i32, %c0_i32_0 : i32, i32
  }
  func.func @transform_5(%arg0: i32) -> (i32, i32) {
    %c0_i32 = arith.constant 0 : i32
    %c0_i32_0 = arith.constant 0 : i32
    %c0_i32_1 = arith.constant 0 : i32
    return %c0_i32, %c0_i32_0 : i32, i32
  }
  func.func @transform_6(%arg0: i32) -> (i32, i32) {
    %c0_i32 = arith.constant 0 : i32
    %c0_i32_0 = arith.constant 0 : i32
    %c0_i32_1 = arith.constant 0 : i32
    return %c0_i32, %c0_i32_0 : i32, i32
  }
  func.func @transform_7(%arg0: i32) -> (i32, i32) {
    %c0_i32 = arith.constant 0 : i32
    %c0_i32_0 = arith.constant 0 : i32
    %c0_i32_1 = arith.constant 0 : i32
    return %c0_i32, %c0_i32_0 : i32, i32
  }
  func.func @transform_8(%arg0: i32) -> (i32, i32) {
    %c0_i32 = arith.constant 0 : i32
    %c0_i32_0 = arith.constant 0 : i32
    %c0_i32_1 = arith.constant 0 : i32
    return %c0_i32, %c0_i32_0 : i32, i32
  }
  func.func @transform_9(%arg0: i32) -> (i32, i32) {
    %c0_i32 = arith.constant 0 : i32
    %c0_i32_0 = arith.constant 0 : i32
    %c0_i32_1 = arith.constant 0 : i32
    return %c0_i32, %c0_i32_0 : i32, i32
  }
  func.func @transform_10(%arg0: i32) -> (i32, i32) {
    %c0_i32 = arith.constant 0 : i32
    %c0_i32_0 = arith.constant 0 : i32
    %c0_i32_1 = arith.constant 0 : i32
    return %c0_i32, %c0_i32_0 : i32, i32
  }
  func.func @transform_11(%arg0: i32) -> (i32, i32) {
    %c0_i32 = arith.constant 0 : i32
    %c0_i32_0 = arith.constant 0 : i32
    %c0_i32_1 = arith.constant 0 : i32
    return %c0_i32, %c0_i32_0 : i32, i32
  }
  func.func @transform_12(%arg0: i32) -> (i32, i32) {
    %c0_i32 = arith.constant 0 : i32
    %c0_i32_0 = arith.constant 0 : i32
    %c0_i32_1 = arith.constant 0 : i32
    return %c0_i32, %c0_i32_0 : i32, i32
  }
  func.func @transform_13(%arg0: i32) -> (i32, i32) {
    %c0_i32 = arith.constant 0 : i32
    %c0_i32_0 = arith.constant 0 : i32
    %c0_i32_1 = arith.constant 0 : i32
    return %c0_i32, %c0_i32_0 : i32, i32
  }
  func.func @transform_14(%arg0: i32) -> (i32, i32) {
    %c0_i32 = arith.constant 0 : i32
    %c0_i32_0 = arith.constant 0 : i32
    return %arg0, %c0_i32 : i32, i32
  }
}

</mosaic_0001>

<llo_original>
// kernel: tpu_custom_call.1
$region0: #{tpu_custom_call.1}
  #allocation0 [shape = 'u32[]', space=smem, size = 0x4, offset = 0x4, fixed_abs, tag = 'smem constant byte address 0x4 - core index']
  #allocation1 [shape = 'u32[144,128]{1,0:T(1,128)}', space=vmem, size = 0x12000, scoped, tag = 'internal scratch']
  %s0 = inlined_call_operand.hbm [shape: f32[32,128], index: 0, kind: input, shape index: {}]
  %s1 = inlined_call_operand.hbm [shape: f32[32,128], index: 1, kind: input, shape index: {}]
  %s2 = inlined_call_operand.vmem [shape: f32[16,1], index: 2, kind: input, shape index: {}]
  %s3 = inlined_call_operand.vmem [shape: f32[16,1], index: 3, kind: input, shape index: {}]
  %s4 = inlined_call_operand.hbm [shape: bf16[384,128], index: 4, kind: input, shape index: {}]
  %s5 = inlined_call_operand.vmem [shape: f32[1,128], index: 5, kind: input, shape index: {}]
  %s6 = inlined_call_operand.hbm [shape: bf16[384,128], index: 6, kind: input, shape index: {}]
  %s7 = inlined_call_operand.vmem [shape: f32[1,128], index: 7, kind: input, shape index: {}]
  %s8 = inlined_call_operand.hbm [shape: bf16[384,128], index: 8, kind: input, shape index: {}]
  %s9 = inlined_call_operand.vmem [shape: f32[1,128], index: 9, kind: input, shape index: {}]
  %s10 = inlined_call_operand.hbm [shape: bf16[384,128], index: 10, kind: input, shape index: {}]
  %s11 = inlined_call_operand.vmem [shape: f32[1,128], index: 11, kind: input, shape index: {}]
  %s12 = inlined_call_operand.vmem [shape: bf16[128,128], index: 12, kind: input, shape index: {}]
  %s13 = inlined_call_operand.vmem [shape: f32[1,128], index: 13, kind: input, shape index: {}]
  %s14 = inlined_call_operand.hbm [shape: f32[32,128], index: 14, kind: output, shape index: {}]
  %s15 = sld [smem:[#allocation0]]
  $region113: #{tpu_custom_call.1} parent=0
    _
  %s17 = ssub.s32 1, %s15
  %s18 = scalar_select 0, %s17, %s15
  $region1: #{tpu_custom_call.1} parent=0
    #allocation2 [shape = 'u8[16384]{0}', space=vmem, size = 0x4000, scoped, tag = 'input window, operand 0']
    #allocation3 [shape = 's32[2]{0}', space=sflag, size = 0x8, scoped, tag = 'scoped memory for tpu_custom_call.1']
    #allocation4 [shape = 's32[2]{0}', space=sflag, size = 0x8, scoped, tag = 'scoped memory for tpu_custom_call.1']
    #allocation5 [shape = 'u8[16384]{0}', space=vmem, size = 0x4000, scoped, tag = 'input window, operand 1']
    #allocation6 [shape = 's32[2]{0}', space=sflag, size = 0x8, scoped, tag = 'scoped memory for tpu_custom_call.1']
    #allocation7 [shape = 'u8[98304]{0}', space=vmem, size = 0x18000, scoped, tag = 'input window, operand 4, single buffered']
    #allocation8 [shape = 'u8[98304]{0}', space=vmem, size = 0x18000, scoped, tag = 'input window, operand 6, single buffered']
    #allocation9 [shape = 's32[1]{0}', space=sflag, size = 0x4, scoped, tag = 'scoped memory for tpu_custom_call.1']
    #allocation10 [shape = 'u8[98304]{0}', space=vmem, size = 0x18000, scoped, tag = 'input window, operand 8, single buffered']
    #allocation11 [shape = 'u8[98304]{0}', space=vmem, size = 0x18000, scoped, tag = 'input window, operand 10, single buffered']
    #allocation12 [shape = 's32[1]{0}', space=sflag, size = 0x4, scoped, tag = 'scoped memory for tpu_custom_call.1']
    #allocation13 [shape = 'u8[16384]{0}', space=vmem, size = 0x4000, scoped, tag = 'output window, operand 0']
    %19 = vsyncpa [#allocation3], 0
    %s20 = scalar_lea.sflag [#allocation3], 1
    %21 = vsyncpa %s20, 0
    %22 = vsyncpa [#allocation6], 0
    %s23 = scalar_lea.sflag [#allocation6], 1
    %24 = vsyncpa %s23, 0
    %25 = vsyncpa [#allocation9], 0
    %26 = vsyncpa [#allocation12], 0
    %27 = vsyncpa [#allocation4], 0
    %s28 = scalar_lea.sflag [#allocation4], 1
    %29 = vsyncpa %s28, 0
    loop: start=0, step=1, limit=4
    $region2: #{tpu_custom_call.1} parent=1 // loop_pre_header
      _
    $region3: #{tpu_custom_call.1} parent=1 // loop_header
      %s31 = sphi 0, %s35
      %p32 = scmp.ge.s32.totalorder %s31, 4
      %s41 = sphi 0, %s43
      %s44 = sphi 0, %s41
      %s45 = sphi 0, %s44
      %s61 = sphi 0, %s45
      %s67 = sphi 0, %s69
      %s70 = sphi 0, %s67
      %s71 = sphi 0, %s70
      %s87 = sphi 0, %s71
      %s91 = sphi 0, %s91
      %s93 = sphi 0, %s91
      %s94 = sphi 0, %s93
      %s108 = sphi 0, %s94
      %s112 = sphi 0, %s112
      %s114 = sphi 0, %s112
      %s115 = sphi 0, %s114
      %s129 = sphi 0, %s115
      %s133 = sphi 0, %s133
      %s135 = sphi 0, %s133
      %s136 = sphi 0, %s135
      %s150 = sphi 0, %s136
      %s154 = sphi 0, %s154
      %s156 = sphi 0, %s154
      %s157 = sphi 0, %s156
      %s171 = sphi 0, %s157
      %s175 = sphi 0, %s175
      %s177 = sphi 0, %s175
      %s178 = sphi 0, %s177
      %s192 = sphi 0, %s178
      %s196 = sphi 0, %s196
      %s198 = sphi 0, %s196
      %s199 = sphi 0, %s198
      %s213 = sphi 0, %s199
      %s217 = sphi 0, %s217
      %s219 = sphi 0, %s217
      %s220 = sphi 0, %s219
      %s234 = sphi 0, %s220
      %s238 = sphi 0, %s238
      %s240 = sphi 0, %s238
      %s241 = sphi 0, %s240
      %s255 = sphi 0, %s241
      %s259 = sphi 0, %s259
      %s261 = sphi 0, %s259
      %s262 = sphi 0, %s261
      %s276 = sphi 0, %s262
      %s280 = sphi 0, %s280
      %s282 = sphi 0, %s280
      %s283 = sphi 0, %s282
      %s297 = sphi 0, %s283
      %s301 = sphi 0, %s301
      %s303 = sphi 0, %s301
      %s304 = sphi 0, %s303
      %s318 = sphi 0, %s304
      %s322 = sphi 0, %s322
      %s324 = sphi 0, %s322
      %s325 = sphi 0, %s324
      %s339 = sphi 0, %s325
      %s345 = sphi 0, %s347
      %s348 = sphi 0, %s345
      %s349 = sphi 0, %s348
      %s365 = sphi 0, %s349
    $region4: #{tpu_custom_call.1} parent=1 // loop_header_branch
      %34 = sbr.rel (%p32) target = $region8
    $region5: #{tpu_custom_call.1} parent=1 // loop_body
      %s36 = ssub.s32 %s31, 1
      %s37 = ssub.s32 %s31, 2
      %s38 = sadd.s32 %s31, 1
      %s39 = ssub.s32 %s31, %s38
      %p40 = scmp.eq.s32.totalorder %s39, 0
      %s42 = sadd.s32 %s41, 1
      %s43 = scalar_select %p40, %s41, %s42
      %p46 = pneg %p40
      %p47 = scmp.eq.s32.totalorder %s31, 1
      %p48 = por %p46, %p47
      %p49 = scmp.ne.s32.totalorder %s41, %s44
      %p50 = scmp.eq.s32.totalorder %s31, 0
      %p51 = por %p49, %p50
      %p52 = scmp.ne.s32.totalorder %s41, %s44
      %p53 = scmp.eq.s32.totalorder %s36, 1
      %p54 = por %p52, %p53
      %p55 = scmp.ne.s32.totalorder %s44, %s45
      %p56 = scmp.eq.s32.totalorder %s36, 0
      %p57 = por %p55, %p56
      %p58 = scmp.ne.s32.totalorder %s44, %s45
      %p59 = scmp.eq.s32.totalorder %s37, 1
      %p60 = por %p58, %p59
      %p62 = scmp.ne.s32.totalorder %s45, %s61
      %p63 = scmp.eq.s32.totalorder %s37, 0
      %p64 = por %p62, %p63
      %s65 = ssub.s32 %s31, %s38
      %p66 = scmp.eq.s32.totalorder %s65, 0
      %s68 = sadd.s32 %s67, 1
      %s69 = scalar_select %p66, %s67, %s68
      %p72 = pneg %p66
      %p73 = scmp.eq.s32.totalorder %s31, 1
      %p74 = por %p72, %p73
      %p75 = scmp.ne.s32.totalorder %s67, %s70
      %p76 = scmp.eq.s32.totalorder %s31, 0
      %p77 = por %p75, %p76
      %p78 = scmp.ne.s32.totalorder %s67, %s70
      %p79 = scmp.eq.s32.totalorder %s36, 1
      %p80 = por %p78, %p79
      %p81 = scmp.ne.s32.totalorder %s70, %s71
      %p82 = scmp.eq.s32.totalorder %s36, 0
      %p83 = por %p81, %p82
      %p84 = scmp.ne.s32.totalorder %s70, %s71
      %p85 = scmp.eq.s32.totalorder %s37, 1
      %p86 = por %p84, %p85
      %p88 = scmp.ne.s32.totalorder %s71, %s87
      %p89 = scmp.eq.s32.totalorder %s37, 0
      %p90 = por %p88, %p89
      %s92 = sadd.s32 %s91, 1
      %p95 = scmp.eq.s32.totalorder %s31, 1
      %p96 = scmp.ne.s32.totalorder %s91, %s93
      %p97 = scmp.eq.s32.totalorder %s31, 0
      %p98 = por %p96, %p97
      %p99 = scmp.ne.s32.totalorder %s91, %s93
      %p100 = scmp.eq.s32.totalorder %s36, 1
      %p101 = por %p99, %p100
      %p102 = scmp.ne.s32.totalorder %s93, %s94
      %p103 = scmp.eq.s32.totalorder %s36, 0
      %p104 = por %p102, %p103
      %p105 = scmp.ne.s32.totalorder %s93, %s94
      %p106 = scmp.eq.s32.totalorder %s37, 1
      %p107 = por %p105, %p106
      %p109 = scmp.ne.s32.totalorder %s94, %s108
      %p110 = scmp.eq.s32.totalorder %s37, 0
      %p111 = por %p109, %p110
      %s113 = sadd.s32 %s112, 1
      %p116 = scmp.eq.s32.totalorder %s31, 1
      %p117 = scmp.ne.s32.totalorder %s112, %s114
      %p118 = scmp.eq.s32.totalorder %s31, 0
      %p119 = por %p117, %p118
      %p120 = scmp.ne.s32.totalorder %s112, %s114
      %p121 = scmp.eq.s32.totalorder %s36, 1
      %p122 = por %p120, %p121
      %p123 = scmp.ne.s32.totalorder %s114, %s115
      %p124 = scmp.eq.s32.totalorder %s36, 0
      %p125 = por %p123, %p124
      %p126 = scmp.ne.s32.totalorder %s114, %s115
      %p127 = scmp.eq.s32.totalorder %s37, 1
      %p128 = por %p126, %p127
      %p130 = scmp.ne.s32.totalorder %s115, %s129
      %p131 = scmp.eq.s32.totalorder %s37, 0
      %p132 = por %p130, %p131
      %s134 = sadd.s32 %s133, 1
      %p137 = scmp.eq.s32.totalorder %s31, 1
      %p138 = scmp.ne.s32.totalorder %s133, %s135
      %p139 = scmp.eq.s32.totalorder %s31, 0
      %p140 = por %p138, %p139
      %p141 = scmp.ne.s32.totalorder %s133, %s135
      %p142 = scmp.eq.s32.totalorder %s36, 1
      %p143 = por %p141, %p142
      %p144 = scmp.ne.s32.totalorder %s135, %s136
      %p145 = scmp.eq.s32.totalorder %s36, 0
      %p146 = por %p144, %p145
      %p147 = scmp.ne.s32.totalorder %s135, %s136
      %p148 = scmp.eq.s32.totalorder %s37, 1
      %p149 = por %p147, %p148
      %p151 = scmp.ne.s32.totalorder %s136, %s150
      %p152 = scmp.eq.s32.totalorder %s37, 0
      %p153 = por %p151, %p152
      %s155 = sadd.s32 %s154, 1
      %p158 = scmp.eq.s32.totalorder %s31, 1
      %p159 = scmp.ne.s32.totalorder %s154, %s156
      %p160 = scmp.eq.s32.totalorder %s31, 0
      %p161 = por %p159, %p160
      %p162 = scmp.ne.s32.totalorder %s154, %s156
      %p163 = scmp.eq.s32.totalorder %s36, 1
      %p164 = por %p162, %p163
      %p165 = scmp.ne.s32.totalorder %s156, %s157
      %p166 = scmp.eq.s32.totalorder %s36, 0
      %p167 = por %p165, %p166
      %p168 = scmp.ne.s32.totalorder %s156, %s157
      %p169 = scmp.eq.s32.totalorder %s37, 1
      %p170 = por %p168, %p169
      %p172 = scmp.ne.s32.totalorder %s157, %s171
      %p173 = scmp.eq.s32.totalorder %s37, 0
      %p174 = por %p172, %p173
      %s176 = sadd.s32 %s175, 1
      %p179 = scmp.eq.s32.totalorder %s31, 1
      %p180 = scmp.ne.s32.totalorder %s175, %s177
      %p181 = scmp.eq.s32.totalorder %s31, 0
      %p182 = por %p180, %p181
      %p183 = scmp.ne.s32.totalorder %s175, %s177
      %p184 = scmp.eq.s32.totalorder %s36, 1
      %p185 = por %p183, %p184
      %p186 = scmp.ne.s32.totalorder %s177, %s178
      %p187 = scmp.eq.s32.totalorder %s36, 0
      %p188 = por %p186, %p187
      %p189 = scmp.ne.s32.totalorder %s177, %s178
      %p190 = scmp.eq.s32.totalorder %s37, 1
      %p191 = por %p189, %p190
      %p193 = scmp.ne.s32.totalorder %s178, %s192
      %p194 = scmp.eq.s32.totalorder %s37, 0
      %p195 = por %p193, %p194
      %s197 = sadd.s32 %s196, 1
      %p200 = scmp.eq.s32.totalorder %s31, 1
      %p201 = scmp.ne.s32.totalorder %s196, %s198
      %p202 = scmp.eq.s32.totalorder %s31, 0
      %p203 = por %p201, %p202
      %p204 = scmp.ne.s32.totalorder %s196, %s198
      %p205 = scmp.eq.s32.totalorder %s36, 1
      %p206 = por %p204, %p205
      %p207 = scmp.ne.s32.totalorder %s198, %s199
      %p208 = scmp.eq.s32.totalorder %s36, 0
      %p209 = por %p207, %p208
      %p210 = scmp.ne.s32.totalorder %s198, %s199
      %p211 = scmp.eq.s32.totalorder %s37, 1
      %p212 = por %p210, %p211
      %p214 = scmp.ne.s32.totalorder %s199, %s213
      %p215 = scmp.eq.s32.totalorder %s37, 0
      %p216 = por %p214, %p215
      %s218 = sadd.s32 %s217, 1
      %p221 = scmp.eq.s32.totalorder %s31, 1
      %p222 = scmp.ne.s32.totalorder %s217, %s219
      %p223 = scmp.eq.s32.totalorder %s31, 0
      %p224 = por %p222, %p223
      %p225 = scmp.ne.s32.totalorder %s217, %s219
      %p226 = scmp.eq.s32.totalorder %s36, 1
      %p227 = por %p225, %p226
      %p228 = scmp.ne.s32.totalorder %s219, %s220
      %p229 = scmp.eq.s32.totalorder %s36, 0
      %p230 = por %p228, %p229
      %p231 = scmp.ne.s32.totalorder %s219, %s220
      %p232 = scmp.eq.s32.totalorder %s37, 1
      %p233 = por %p231, %p232
      %p235 = scmp.ne.s32.totalorder %s220, %s234
      %p236 = scmp.eq.s32.totalorder %s37, 0
      %p237 = por %p235, %p236
      %s239 = sadd.s32 %s238, 1
      %p242 = scmp.eq.s32.totalorder %s31, 1
      %p243 = scmp.ne.s32.totalorder %s238, %s240
      %p244 = scmp.eq.s32.totalorder %s31, 0
      %p245 = por %p243, %p244
      %p246 = scmp.ne.s32.totalorder %s238, %s240
      %p247 = scmp.eq.s32.totalorder %s36, 1
      %p248 = por %p246, %p247
      %p249 = scmp.ne.s32.totalorder %s240, %s241
      %p250 = scmp.eq.s32.totalorder %s36, 0
      %p251 = por %p249, %p250
      %p252 = scmp.ne.s32.totalorder %s240, %s241
      %p253 = scmp.eq.s32.totalorder %s37, 1
      %p254 = por %p252, %p253
      %p256 = scmp.ne.s32.totalorder %s241, %s255
      %p257 = scmp.eq.s32.totalorder %s37, 0
      %p258 = por %p256, %p257
      %s260 = sadd.s32 %s259, 1
      %p263 = scmp.eq.s32.totalorder %s31, 1
      %p264 = scmp.ne.s32.totalorder %s259, %s261
      %p265 = scmp.eq.s32.totalorder %s31, 0
      %p266 = por %p264, %p265
      %p267 = scmp.ne.s32.totalorder %s259, %s261
      %p268 = scmp.eq.s32.totalorder %s36, 1
      %p269 = por %p267, %p268
      %p270 = scmp.ne.s32.totalorder %s261, %s262
      %p271 = scmp.eq.s32.totalorder %s36, 0
      %p272 = por %p270, %p271
      %p273 = scmp.ne.s32.totalorder %s261, %s262
      %p274 = scmp.eq.s32.totalorder %s37, 1
      %p275 = por %p273, %p274
      %p277 = scmp.ne.s32.totalorder %s262, %s276
      %p278 = scmp.eq.s32.totalorder %s37, 0
      %p279 = por %p277, %p278
      %s281 = sadd.s32 %s280, 1
      %p284 = scmp.eq.s32.totalorder %s31, 1
      %p285 = scmp.ne.s32.totalorder %s280, %s282
      %p286 = scmp.eq.s32.totalorder %s31, 0
      %p287 = por %p285, %p286
      %p288 = scmp.ne.s32.totalorder %s280, %s282
      %p289 = scmp.eq.s32.totalorder %s36, 1
      %p290 = por %p288, %p289
      %p291 = scmp.ne.s32.totalorder %s282, %s283
      %p292 = scmp.eq.s32.totalorder %s36, 0
      %p293 = por %p291, %p292
      %p294 = scmp.ne.s32.totalorder %s282, %s283
      %p295 = scmp.eq.s32.totalorder %s37, 1
      %p296 = por %p294, %p295
      %p298 = scmp.ne.s32.totalorder %s283, %s297
      %p299 = scmp.eq.s32.totalorder %s37, 0
      %p300 = por %p298, %p299
      %s302 = sadd.s32 %s301, 1
      %p305 = scmp.eq.s32.totalorder %s31, 1
      %p306 = scmp.ne.s32.totalorder %s301, %s303
      %p307 = scmp.eq.s32.totalorder %s31, 0
      %p308 = por %p306, %p307
      %p309 = scmp.ne.s32.totalorder %s301, %s303
      %p310 = scmp.eq.s32.totalorder %s36, 1
      %p311 = por %p309, %p310
      %p312 = scmp.ne.s32.totalorder %s303, %s304
      %p313 = scmp.eq.s32.totalorder %s36, 0
      %p314 = por %p312, %p313
      %p315 = scmp.ne.s32.totalorder %s303, %s304
      %p316 = scmp.eq.s32.totalorder %s37, 1
      %p317 = por %p315, %p316
      %p319 = scmp.ne.s32.totalorder %s304, %s318
      %p320 = scmp.eq.s32.totalorder %s37, 0
      %p321 = por %p319, %p320
      %s323 = sadd.s32 %s322, 1
      %p326 = scmp.eq.s32.totalorder %s31, 1
      %p327 = scmp.ne.s32.totalorder %s322, %s324
      %p328 = scmp.eq.s32.totalorder %s31, 0
      %p329 = por %p327, %p328
      %p330 = scmp.ne.s32.totalorder %s322, %s324
      %p331 = scmp.eq.s32.totalorder %s36, 1
      %p332 = por %p330, %p331
      %p333 = scmp.ne.s32.totalorder %s324, %s325
      %p334 = scmp.eq.s32.totalorder %s36, 0
      %p335 = por %p333, %p334
      %p336 = scmp.ne.s32.totalorder %s324, %s325
      %p337 = scmp.eq.s32.totalorder %s37, 1
      %p338 = por %p336, %p337
      %p340 = scmp.ne.s32.totalorder %s325, %s339
      %p341 = scmp.eq.s32.totalorder %s37, 0
      %p342 = por %p340, %p341
      %s343 = ssub.s32 %s31, %s38
      %p344 = scmp.eq.s32.totalorder %s343, 0
      %s346 = sadd.s32 %s345, 1
      %s347 = scalar_select %p344, %s345, %s346
      %p350 = pneg %p344
      %p351 = scmp.eq.s32.totalorder %s31, 1
      %p352 = por %p350, %p351
      %p353 = scmp.ne.s32.totalorder %s345, %s348
      %p354 = scmp.eq.s32.totalorder %s31, 0
      %p355 = por %p353, %p354
      %p356 = scmp.ne.s32.totalorder %s345, %s348
      %p357 = scmp.eq.s32.totalorder %s36, 1
      %p358 = por %p356, %p357
      %p359 = scmp.ne.s32.totalorder %s348, %s349
      %p360 = scmp.eq.s32.totalorder %s36, 0
      %p361 = por %p359, %p360
      %p362 = scmp.ne.s32.totalorder %s348, %s349
      %p363 = scmp.eq.s32.totalorder %s37, 1
      %p364 = por %p362, %p363
      %p366 = scmp.ne.s32.totalorder %s349, %s365
      %p367 = scmp.eq.s32.totalorder %s37, 0
      %p368 = por %p366, %p367
      %p369 = scmp.le.s32.totalorder 1, %s31
      %p370 = scmp.lt.s32.totalorder %s31, 3
      %p371 = pnand %p369, %p370
      %p372 = pneg %p371
      // Predicated region
      $region9: #{tpu_custom_call.1} parent=5 // pred_check
        _
      $region10: #{tpu_custom_call.1} parent=5 // pred_check_branch
        %374 = sbr.rel (%p371) target = $region12
      $region11: #{tpu_custom_call.1} parent=5 // pred_region
        %s375 = ssub.s32 %s31, 1
        // Predicated region
        $region13: #{tpu_custom_call.1} parent=11 // pred_check
          %p376 = pneg %p104
        $region14: #{tpu_custom_call.1} parent=11 // pred_check_branch
          %378 = sbr.rel (%p376) target = $region16
        $region15: #{tpu_custom_call.1} parent=11 // pred_region
          _
        $region16: #{tpu_custom_call.1} parent=11 // pred_fallthru
          _
        // Predicated region
        $region17: #{tpu_custom_call.1} parent=11 // pred_check
          %p379 = pneg %p125
        $region18: #{tpu_custom_call.1} parent=11 // pred_check_branch
          %381 = sbr.rel (%p379) target = $region20
        $region19: #{tpu_custom_call.1} parent=11 // pred_region
          _
        $region20: #{tpu_custom_call.1} parent=11 // pred_fallthru
          _
        // Predicated region
        $region21: #{tpu_custom_call.1} parent=11 // pred_check
          %p382 = pneg %p146
        $region22: #{tpu_custom_call.1} parent=11 // pred_check_branch
          %384 = sbr.rel (%p382) target = $region24
        $region23: #{tpu_custom_call.1} parent=11 // pred_region
          %s386 = ssub.s32 3072, 3072
          %387 = vsyncadd [#allocation6], %s386
          %s388 = sshll.u32 [#allocation7], 4
          %s389 = int_to_ptr.vmem [resolvable:$true] %s388
          %394 = dma.hbm_to_vmem [thread:$0]  %s4, 3072, %s389, [#allocation6], 64, 64, 4
        $region24: #{tpu_custom_call.1} parent=11 // pred_fallthru
          _
        // Predicated region
        $region25: #{tpu_custom_call.1} parent=11 // pred_check
          %p395 = pneg %p167
        $region26: #{tpu_custom_call.1} parent=11 // pred_check_branch
          %397 = sbr.rel (%p395) target = $region28
        $region27: #{tpu_custom_call.1} parent=11 // pred_region
          _
        $region28: #{tpu_custom_call.1} parent=11 // pred_fallthru
          _
        // Predicated region
        $region29: #{tpu_custom_call.1} parent=11 // pred_check
          %p398 = pneg %p188
        $region30: #{tpu_custom_call.1} parent=11 // pred_check_branch
          %400 = sbr.rel (%p398) target = $region32
        $region31: #{tpu_custom_call.1} parent=11 // pred_region
          %s402 = ssub.s32 3072, 3072
          %403 = vsyncadd [#allocation9], %s402
          %s404 = sshll.u32 [#allocation8], 4
          %s405 = int_to_ptr.vmem [resolvable:$true] %s404
          %410 = dma.hbm_to_vmem [thread:$0]  %s6, 3072, %s405, [#allocation9], 64, 64, 4
        $region32: #{tpu_custom_call.1} parent=11 // pred_fallthru
          _
        // Predicated region
        $region33: #{tpu_custom_call.1} parent=11 // pred_check
          %p411 = pneg %p209
        $region34: #{tpu_custom_call.1} parent=11 // pred_check_branch
          %413 = sbr.rel (%p411) target = $region36
        $region35: #{tpu_custom_call.1} parent=11 // pred_region
          _
        $region36: #{tpu_custom_call.1} parent=11 // pred_fallthru
          _
        // Predicated region
        $region37: #{tpu_custom_call.1} parent=11 // pred_check
          %p414 = pneg %p230
        $region38: #{tpu_custom_call.1} parent=11 // pred_check_branch
          %416 = sbr.rel (%p414) target = $region40
        $region39: #{tpu_custom_call.1} parent=11 // pred_region
          %s418 = ssub.s32 3072, 3072
          %419 = vsyncadd [#allocation9], %s418
          %s420 = sshll.u32 [#allocation10], 4
          %s421 = int_to_ptr.vmem [resolvable:$true] %s420
          %426 = dma.hbm_to_vmem [thread:$0]  %s8, 3072, %s421, [#allocation9], 64, 64, 4
        $region40: #{tpu_custom_call.1} parent=11 // pred_fallthru
          _
        // Predicated region
        $region41: #{tpu_custom_call.1} parent=11 // pred_check
          %p427 = pneg %p251
        $region42: #{tpu_custom_call.1} parent=11 // pred_check_branch
          %429 = sbr.rel (%p427) target = $region44
        $region43: #{tpu_custom_call.1} parent=11 // pred_region
          _
        $region44: #{tpu_custom_call.1} parent=11 // pred_fallthru
          _
        // Predicated region
        $region45: #{tpu_custom_call.1} parent=11 // pred_check
          %p430 = pneg %p272
        $region46: #{tpu_custom_call.1} parent=11 // pred_check_branch
          %432 = sbr.rel (%p430) target = $region48
        $region47: #{tpu_custom_call.1} parent=11 // pred_region
          %s434 = ssub.s32 3072, 3072
          %435 = vsyncadd [#allocation12], %s434
          %s436 = sshll.u32 [#allocation11], 4
          %s437 = int_to_ptr.vmem [resolvable:$true] %s436
          %442 = dma.hbm_to_vmem [thread:$0]  %s10, 3072, %s437, [#allocation12], 64, 64, 4
        $region48: #{tpu_custom_call.1} parent=11 // pred_fallthru
          _
        // Predicated region
        $region49: #{tpu_custom_call.1} parent=11 // pred_check
          %p443 = pneg %p293
        $region50: #{tpu_custom_call.1} parent=11 // pred_check_branch
          %445 = sbr.rel (%p443) target = $region52
        $region51: #{tpu_custom_call.1} parent=11 // pred_region
          _
        $region52: #{tpu_custom_call.1} parent=11 // pred_fallthru
          _
        // Predicated region
        $region53: #{tpu_custom_call.1} parent=11 // pred_check
          %p446 = pneg %p314
        $region54: #{tpu_custom_call.1} parent=11 // pred_check_branch
          %448 = sbr.rel (%p446) target = $region56
        $region55: #{tpu_custom_call.1} parent=11 // pred_region
          _
        $region56: #{tpu_custom_call.1} parent=11 // pred_fallthru
          _
        // Predicated region
        $region57: #{tpu_custom_call.1} parent=11 // pred_check
          %p449 = pneg %p335
        $region58: #{tpu_custom_call.1} parent=11 // pred_check_branch
          %451 = sbr.rel (%p449) target = $region60
        $region59: #{tpu_custom_call.1} parent=11 // pred_region
          _
        $region60: #{tpu_custom_call.1} parent=11 // pred_fallthru
          _
      $region12: #{tpu_custom_call.1} parent=5 // pred_fallthru
        _
      %p452 = scmp.lt.s32.totalorder %s31, 2
      // Predicated region
      $region61: #{tpu_custom_call.1} parent=5 // pred_check
        %p453 = pneg %p452
      $region62: #{tpu_custom_call.1} parent=5 // pred_check_branch
        %455 = sbr.rel (%p453) target = $region64
      $region63: #{tpu_custom_call.1} parent=5 // pred_region
        // Predicated region
        $region65: #{tpu_custom_call.1} parent=63 // pred_check
          %p456 = pneg %p51
        $region66: #{tpu_custom_call.1} parent=63 // pred_check_branch
          %458 = sbr.rel (%p456) target = $region68
        $region67: #{tpu_custom_call.1} parent=63 // pred_region
          %s459 = sand.u32 %s41, 1
          %s460 = scalar_lea.sflag [#allocation3], %s459
          %s461 = sand.u32 %s41, 1
          %s462 = smul.addr %s461, 16
          %s463 = scalar_lea.vmem [#allocation2], %s462
          %s464 = smul.u32 2, %s31
          %s466 = ssub.s32 256, 256
          %467 = vsyncadd %s460, %s466
          %s468 = smul.addr %s464, 128
          %s469 = scalar_lea.hbm %s0, %s468
          %s470 = sshll.u32 %s463, 4
          %s471 = int_to_ptr.vmem [resolvable:$true] %s470
          %476 = dma.hbm_to_vmem [thread:$0]  %s469, 256, %s471, %s460, 128, 128, 8
        $region68: #{tpu_custom_call.1} parent=63 // pred_fallthru
          _
        // Predicated region
        $region69: #{tpu_custom_call.1} parent=63 // pred_check
          %p477 = pneg %p77
        $region70: #{tpu_custom_call.1} parent=63 // pred_check_branch
          %479 = sbr.rel (%p477) target = $region72
        $region71: #{tpu_custom_call.1} parent=63 // pred_region
          %s480 = sand.u32 %s31, 1
          %s481 = scalar_lea.sflag [#allocation6], %s480
          %s482 = sand.u32 %s67, 1
          %s483 = smul.addr %s482, 16
          %s484 = scalar_lea.vmem [#allocation5], %s483
          %s485 = smul.u32 2, %s31
          %s487 = ssub.s32 256, 256
          %488 = vsyncadd %s481, %s487
          %s489 = smul.addr %s485, 128
          %s490 = scalar_lea.hbm %s1, %s489
          %s491 = sshll.u32 %s484, 4
          %s492 = int_to_ptr.vmem [resolvable:$true] %s491
          %497 = dma.hbm_to_vmem [thread:$0]  %s490, 256, %s492, %s481, 128, 128, 8
        $region72: #{tpu_custom_call.1} parent=63 // pred_fallthru
          _
      $region64: #{tpu_custom_call.1} parent=5 // pred_fallthru
        _
      %p498 = scmp.le.s32.totalorder 1, %s31
      %p499 = scmp.lt.s32.totalorder %s31, 3
      %p500 = pnand %p498, %p499
      %p501 = pneg %p500
      // Predicated region
      $region73: #{tpu_custom_call.1} parent=5 // pred_check
        _
      $region74: #{tpu_custom_call.1} parent=5 // pred_check_branch
        %503 = sbr.rel (%p500) target = $region76
      $region75: #{tpu_custom_call.1} parent=5 // pred_region
        %s504 = ssub.s32 %s31, 1
        %s505 = sand.u32 %s44, 1
        %s506 = scalar_lea.sflag [#allocation3], %s505
        %s507 = sand.u32 %s44, 1
        %s508 = smul.addr %s507, 16
        %s509 = scalar_lea.vmem [#allocation2], %s508
        // Predicated region
        $region77: #{tpu_custom_call.1} parent=75 // pred_check
          %p510 = pneg %p57
        $region78: #{tpu_custom_call.1} parent=75 // pred_check_branch
          %512 = sbr.rel (%p510) target = $region80
        $region79: #{tpu_custom_call.1} parent=75 // pred_region
          %513 = dma.done %s506, 256
        $region80: #{tpu_custom_call.1} parent=75 // pred_fallthru
          _
        %s514 = sand.u32 %s36, 1
        %s515 = scalar_lea.sflag [#allocation6], %s514
        %s516 = sand.u32 %s70, 1
        %s517 = smul.addr %s516, 16
        %s518 = scalar_lea.vmem [#allocation5], %s517
        // Predicated region
        $region81: #{tpu_custom_call.1} parent=75 // pred_check
          %p519 = pneg %p83
        $region82: #{tpu_custom_call.1} parent=75 // pred_check_branch
          %521 = sbr.rel (%p519) target = $region84
        $region83: #{tpu_custom_call.1} parent=75 // pred_region
          %522 = dma.done %s515, 256
        $region84: #{tpu_custom_call.1} parent=75 // pred_fallthru
          _
        // Predicated region
        $region85: #{tpu_custom_call.1} parent=75 // pred_check
          %p523 = pneg %p146
        $region86: #{tpu_custom_call.1} parent=75 // pred_check_branch
          %525 = sbr.rel (%p523) target = $region88
        $region87: #{tpu_custom_call.1} parent=75 // pred_region
          %526 = dma.done [#allocation6], 3072
        $region88: #{tpu_custom_call.1} parent=75 // pred_fallthru
          _
        // Predicated region
        $region89: #{tpu_custom_call.1} parent=75 // pred_check
          %p527 = pneg %p188
        $region90: #{tpu_custom_call.1} parent=75 // pred_check_branch
          %529 = sbr.rel (%p527) target = $region92
        $region91: #{tpu_custom_call.1} parent=75 // pred_region
          %530 = dma.done [#allocation9], 3072
        $region92: #{tpu_custom_call.1} parent=75 // pred_fallthru
          _
        // Predicated region
        $region93: #{tpu_custom_call.1} parent=75 // pred_check
          %p531 = pneg %p230
        $region94: #{tpu_custom_call.1} parent=75 // pred_check_branch
          %533 = sbr.rel (%p531) target = $region96
        $region95: #{tpu_custom_call.1} parent=75 // pred_region
          %534 = dma.done [#allocation9], 3072
        $region96: #{tpu_custom_call.1} parent=75 // pred_fallthru
          _
        // Predicated region
        $region97: #{tpu_custom_call.1} parent=75 // pred_check
          %p535 = pneg %p272
        $region98: #{tpu_custom_call.1} parent=75 // pred_check_branch
          %537 = sbr.rel (%p535) target = $region100
        $region99: #{tpu_custom_call.1} parent=75 // pred_region
          %538 = dma.done [#allocation12], 3072
        $region100: #{tpu_custom_call.1} parent=75 // pred_fallthru
          _
        %s539 = sand.u32 %s44, 1
        %s540 = scalar_lea.sflag [#allocation3], %s539
        %s541 = sand.u32 %s44, 1
        %s542 = smul.addr %s541, 16
        %s543 = scalar_lea.vmem [#allocation2], %s542
        %p544 = pneg %p57
        %p545 = pneg %p54
        %s546 = sand.u32 %s36, 1
        %s547 = scalar_lea.sflag [#allocation6], %s546
        %s548 = sand.u32 %s70, 1
        %s549 = smul.addr %s548, 16
        %s550 = scalar_lea.vmem [#allocation5], %s549
        %p551 = pneg %p83
        %p552 = pneg %p80
        %p553 = pneg %p104
        %p554 = pneg %p101
        %p555 = pneg %p125
        %p556 = pneg %p122
        %p557 = pneg %p146
        %p558 = pneg %p143
        %p559 = pneg %p167
        %p560 = pneg %p164
        %p561 = pneg %p188
        %p562 = pneg %p185
        %p563 = pneg %p209
        %p564 = pneg %p206
        %p565 = pneg %p230
        %p566 = pneg %p227
        %p567 = pneg %p251
        %p568 = pneg %p248
        %p569 = pneg %p272
        %p570 = pneg %p269
        %p571 = pneg %p293
        %p572 = pneg %p290
        %p573 = pneg %p314
        %p574 = pneg %p311
        %p575 = pneg %p335
        %p576 = pneg %p332
        %p577 = pneg %p361
        %p578 = pneg %p358
        %s579 = sand.u32 %s348, 1
        %s580 = scalar_lea.sflag [#allocation4], %s579
        %s581 = sand.u32 %s348, 1
        %s582 = smul.addr %s581, 16
        %s583 = scalar_lea.vmem [#allocation13], %s582
        %s584 = smul.u32 2, %s36
        %s585 = smul.u32 2, %s36
        %s586 = smul.u32 2, %s36
        %v588 = vld [vmem:[%s2] sm:$0xff]
        %v589 = vld [vmem:[%s2 + $0x8] sm:$0xff]
        %v590 = vld [vmem:[%s3] sm:$0xff]
        %v591 = vld [vmem:[%s3 + $0x8] sm:$0xff]
        %v592 = vld [vmem:[%s509] sm:$0xff]
        %v593 = vld [vmem:[%s509 + $0x8] sm:$0xff]
        %v594 = vld [vmem:[%s518] sm:$0xff]
        %v595 = vld [vmem:[%s518 + $0x8] sm:$0xff]
        %v596 = vmax.f32 %v594, 0.0
        %v597 = vmax.f32 %v595, 0.0
        %v598 = vrot.slane %v596, 7
        %v599 = vrot.slane %v597, 7
        %v600 = vlaneseq
        %v601 = vshrl.u32 %v600, 7
        %vm602 = vcmp.lt.s32.totalorder %v601, 1
        %v603 = vsel %vm602, %v598, %v599
        %v604 = vsel %vm602, %v599, %v598
        %606 = vset.pattern.permute.xlu0 0
        %607 = vperm.xlu0 %606, %v588
        %v608 = vpop.permute.xlu0 %607
        %611 = vset.pattern.permute.xlu0 0
        %612 = vperm.xlu0 %611, %v589
        %v613 = vpop.permute.xlu0 %612
        %v615 = vmul.f32 %v604, %v608
        %v616 = vmul.f32 %v603, %v613
        %v617 = vrot.slane %v596, 1
        %v618 = vrot.slane %v597, 1
        %vm619 = vcmp.lt.s32.totalorder %v601, 7
        %v620 = vsel %vm619, %v617, %v618
        %v621 = vsel %vm619, %v618, %v617
        %623 = vset.pattern.permute.xlu0 0
        %624 = vperm.xlu0 %623, %v590
        %v625 = vpop.permute.xlu0 %624
        %628 = vset.pattern.permute.xlu0 0
        %629 = vperm.xlu0 %628, %v591
        %v630 = vpop.permute.xlu0 %629
        %v632 = vmul.f32 %v620, %v625
        %v633 = vmul.f32 %v621, %v630
        %v634 = vpack.c.bf16 %v616, %v615
        %v635 = vpack.c.bf16 %v597, %v596
        %v636 = vpack.c.bf16 %v633, %v632
        %v637 = vld [vmem:[#allocation7] sm:$0xf]
        %v638 = vld [vmem:[#allocation7 + $0x4] sm:$0xf]
        %v639 = vld [vmem:[#allocation7 + $0x8] sm:$0xf]
        %v640 = vld [vmem:[#allocation7 + $0xc] sm:$0xf]
        %v641 = vld [vmem:[#allocation7 + $0x10] sm:$0xf]
        %v642 = vld [vmem:[#allocation7 + $0x14] sm:$0xf]
        %v643 = vld [vmem:[#allocation7 + $0x18] sm:$0xf]
        %v644 = vld [vmem:[#allocation7 + $0x1c] sm:$0xf]
        %v645 = vld [vmem:[#allocation7 + $0x20] sm:$0xf]
        %v646 = vld [vmem:[#allocation7 + $0x24] sm:$0xf]
        %v647 = vld [vmem:[#allocation7 + $0x28] sm:$0xf]
        %v648 = vld [vmem:[#allocation7 + $0x2c] sm:$0xf]
        %v649 = vld [vmem:[#allocation7 + $0x30] sm:$0xf]
        %v650 = vld [vmem:[#allocation7 + $0x34] sm:$0xf]
        %v651 = vld [vmem:[#allocation7 + $0x38] sm:$0xf]
        %v652 = vld [vmem:[#allocation7 + $0x3c] sm:$0xf]
        %v653 = vld [vmem:[#allocation7 + $0x40] sm:$0xf]
        %v654 = vld [vmem:[#allocation7 + $0x44] sm:$0xf]
        %v655 = vld [vmem:[#allocation7 + $0x48] sm:$0xf]
        %v656 = vld [vmem:[#allocation7 + $0x4c] sm:$0xf]
        %v657 = vld [vmem:[#allocation7 + $0x50] sm:$0xf]
        %v658 = vld [vmem:[#allocation7 + $0x54] sm:$0xf]
        %v659 = vld [vmem:[#allocation7 + $0x58] sm:$0xf]
        %v660 = vld [vmem:[#allocation7 + $0x5c] sm:$0xf]
        %v661 = vld [vmem:[#allocation7 + $0x60] sm:$0xf]
        %v662 = vld [vmem:[#allocation7 + $0x64] sm:$0xf]
        %v663 = vld [vmem:[#allocation7 + $0x68] sm:$0xf]
        %v664 = vld [vmem:[#allocation7 + $0x6c] sm:$0xf]
        %v665 = vld [vmem:[#allocation7 + $0x70] sm:$0xf]
        %v666 = vld [vmem:[#allocation7 + $0x74] sm:$0xf]
        %v667 = vld [vmem:[#allocation7 + $0x78] sm:$0xf]
        %v668 = vld [vmem:[#allocation7 + $0x7c] sm:$0xf]
        %v669 = vld [vmem:[#allocation7 + $0x80] sm:$0xf]
        %v670 = vld [vmem:[#allocation7 + $0x84] sm:$0xf]
        %v671 = vld [vmem:[#allocation7 + $0x88] sm:$0xf]
        %v672 = vld [vmem:[#allocation7 + $0x8c] sm:$0xf]
        %v673 = vld [vmem:[#allocation7 + $0x90] sm:$0xf]
        %v674 = vld [vmem:[#allocation7 + $0x94] sm:$0xf]
        %v675 = vld [vmem:[#allocation7 + $0x98] sm:$0xf]
        %v676 = vld [vmem:[#allocation7 + $0x9c] sm:$0xf]
        %v677 = vld [vmem:[#allocation7 + $0xa0] sm:$0xf]
        %v678 = vld [vmem:[#allocation7 + $0xa4] sm:$0xf]
        %v679 = vld [vmem:[#allocation7 + $0xa8] sm:$0xf]
        %v680 = vld [vmem:[#allocation7 + $0xac] sm:$0xf]
        %v681 = vld [vmem:[#allocation7 + $0xb0] sm:$0xf]
        %v682 = vld [vmem:[#allocation7 + $0xb4] sm:$0xf]
        %v683 = vld [vmem:[#allocation7 + $0xb8] sm:$0xf]
        %v684 = vld [vmem:[#allocation7 + $0xbc] sm:$0xf]
        %v685 = vld [vmem:[%s5] sm:$0x1]
        %v687 = vlaneseq
        %v688 = vshrl.u32 %v687, 7
        %v689 = vsub.s32 0, %v688
        %v690 = vrot.slane %v685, %v689
        %v740 = vunpack.c.l.b16 %v637
        %v741 = vunpack.c.l.b16 %v638
        %v742 = vunpack.c.l.b16 %v639
        %v743 = vunpack.c.l.b16 %v640
        %v744 = vunpack.c.l.b16 %v641
        %v745 = vunpack.c.l.b16 %v642
        %v746 = vunpack.c.l.b16 %v643
        %v747 = vunpack.c.l.b16 %v644
        %v748 = vunpack.c.l.b16 %v645
        %v749 = vunpack.c.l.b16 %v646
        %v750 = vunpack.c.l.b16 %v647
        %v751 = vunpack.c.l.b16 %v648
        %v752 = vunpack.c.l.b16 %v649
        %v753 = vunpack.c.l.b16 %v650
        %v754 = vunpack.c.l.b16 %v651
        %v755 = vunpack.c.l.b16 %v652
        %v756 = vunpack.c.l.b16 %v653
        %v757 = vunpack.c.l.b16 %v654
        %v758 = vunpack.c.l.b16 %v655
        %v759 = vunpack.c.l.b16 %v656
        %v760 = vunpack.c.l.b16 %v657
        %v761 = vunpack.c.l.b16 %v658
        %v762 = vunpack.c.l.b16 %v659
        %v763 = vunpack.c.l.b16 %v660
        %v764 = vunpack.c.l.b16 %v661
        %v765 = vunpack.c.l.b16 %v662
        %v766 = vunpack.c.l.b16 %v663
        %v767 = vunpack.c.l.b16 %v664
        %v768 = vunpack.c.l.b16 %v665
        %v769 = vunpack.c.l.b16 %v666
        %v770 = vunpack.c.l.b16 %v667
        %v771 = vunpack.c.l.b16 %v668
        %v772 = vunpack.c.l.b16 %v669
        %v773 = vunpack.c.l.b16 %v670
        %v774 = vunpack.c.l.b16 %v671
        %v775 = vunpack.c.l.b16 %v672
        %v776 = vunpack.c.l.b16 %v673
        %v777 = vunpack.c.l.b16 %v674
        %v778 = vunpack.c.l.b16 %v675
        %v779 = vunpack.c.l.b16 %v676
        %v780 = vunpack.c.l.b16 %v677
        %v781 = vunpack.c.l.b16 %v678
        %v782 = vunpack.c.l.b16 %v679
        %v783 = vunpack.c.l.b16 %v680
        %v784 = vunpack.c.l.b16 %v681
        %v785 = vunpack.c.l.b16 %v682
        %v786 = vunpack.c.l.b16 %v683
        %v787 = vunpack.c.l.b16 %v684
        %v788 = vpack.c.b16 %v741, %v740
        %v789 = vpack.c.b16 %v743, %v742
        %v790 = vpack.c.b16 %v745, %v744
        %v791 = vpack.c.b16 %v747, %v746
        %v792 = vpack.c.b16 %v749, %v748
        %v793 = vpack.c.b16 %v751, %v750
        %v794 = vpack.c.b16 %v753, %v752
        %v795 = vpack.c.b16 %v755, %v754
        %v796 = vpack.c.b16 %v757, %v756
        %v797 = vpack.c.b16 %v759, %v758
        %v798 = vpack.c.b16 %v761, %v760
        %v799 = vpack.c.b16 %v763, %v762
        %v800 = vpack.c.b16 %v765, %v764
        %v801 = vpack.c.b16 %v767, %v766
        %v802 = vpack.c.b16 %v769, %v768
        %v803 = vpack.c.b16 %v771, %v770
        %v804 = vpack.c.b16 %v773, %v772
        %v805 = vpack.c.b16 %v775, %v774
        %v806 = vpack.c.b16 %v777, %v776
        %v807 = vpack.c.b16 %v779, %v778
        %v808 = vpack.c.b16 %v781, %v780
        %v809 = vpack.c.b16 %v783, %v782
        %v810 = vpack.c.b16 %v785, %v784
        %v811 = vpack.c.b16 %v787, %v786
        %836 = vmatprep.subr.bf16.mxu0 0
        %837 = vmatpush1.bf16.msra.mxu0 %v788
        %838 = vmatprep.subr.bf16.mxu0 0
        %839 = vmatpush1.bf16.msra.mxu0 %v789
        %840 = vmatprep.subr.bf16.mxu0 0
        %841 = vmatpush1.bf16.msra.mxu0 %v790
        %842 = vmatprep.subr.bf16.mxu0 0
        %843 = vmatpush1.bf16.msra.mxu0 %v791
        %844 = vmatprep.subr.bf16.mxu0 0
        %845 = vmatpush1.bf16.msra.mxu0 %v792
        %846 = vmatprep.subr.bf16.mxu0 0
        %847 = vmatpush1.bf16.msra.mxu0 %v793
        %848 = vmatprep.subr.bf16.mxu0 0
        %849 = vmatpush1.bf16.msra.mxu0 %v794
        %850 = vmatprep.subr.bf16.mxu0 0
        %851 = vmatpush1.bf16.msra.mxu0 %v795
        %852 = vmatprep.subr.bf16.mxu0 0
        %853 = vmatpush1.bf16.msra.mxu0 %v796
        %854 = vmatprep.subr.bf16.mxu0 0
        %855 = vmatpush1.bf16.msra.mxu0 %v797
        %856 = vmatprep.subr.bf16.mxu0 0
        %857 = vmatpush1.bf16.msra.mxu0 %v798
        %858 = vmatprep.subr.bf16.mxu0 0
        %859 = vmatpush1.bf16.msra.mxu0 %v799
        %860 = vmatprep.subr.bf16.mxu0 0
        %861 = vmatpush1.bf16.msra.mxu0 %v800
        %862 = vmatprep.subr.bf16.mxu0 0
        %863 = vmatpush1.bf16.msra.mxu0 %v801
        %864 = vmatprep.subr.bf16.mxu0 0
        %865 = vmatpush1.bf16.msra.mxu0 %v802
        %866 = vmatprep.subr.bf16.mxu0 0
        %867 = vmatpush1.bf16.msra.mxu0 %v803
        %868 = vmatprep.mubr.bf16.mxu0 %v635
        %869 = vmatmul.mubr.bf16.gmra.mrb[0].mxu0 %v634
        %v870 = vpop.f32.mrb[0].mxu0
        %v871 = vadd.f32 %v690, %v870
        %v872 = vpop.f32.mrb[0].mxu0
        %v873 = vpop.f32.mrb[0].mxu0
        %v874 = vadd.f32 %v690, %v873
        %v875 = vpop.f32.mrb[0].mxu0
        %876 = vdwg.mxu0
        %877 = vmatprep.subr.bf16.mxu0 0
        %878 = vmatpush1.bf16.msra.mxu0 %v804
        %879 = vmatprep.subr.bf16.mxu0 0
        %880 = vmatpush1.bf16.msra.mxu0 %v805
        %881 = vmatprep.subr.bf16.mxu0 0
        %882 = vmatpush1.bf16.msra.mxu0 %v806
        %883 = vmatprep.subr.bf16.mxu0 0
        %884 = vmatpush1.bf16.msra.mxu0 %v807
        %885 = vmatprep.subr.bf16.mxu0 0
        %886 = vmatpush1.bf16.msra.mxu0 %v808
        %887 = vmatprep.subr.bf16.mxu0 0
        %888 = vmatpush1.bf16.msra.mxu0 %v809
        %889 = vmatprep.subr.bf16.mxu0 0
        %890 = vmatpush1.bf16.msra.mxu0 %v810
        %891 = vmatprep.subr.bf16.mxu0 0
        %892 = vmatpush1.bf16.msra.mxu0 %v811
        %893 = vmatprep.subr.bf16.mxu0 0
        %894 = vmatpush1.bf16.msra.mxu0 0
        %895 = vmatprep.subr.bf16.mxu0 0
        %896 = vmatpush1.bf16.msra.mxu0 0
        %897 = vmatprep.subr.bf16.mxu0 0
        %898 = vmatpush1.bf16.msra.mxu0 0
        %899 = vmatprep.subr.bf16.mxu0 0
        %900 = vmatpush1.bf16.msra.mxu0 0
        %901 = vmatprep.subr.bf16.mxu0 0
        %902 = vmatpush1.bf16.msra.mxu0 0
        %903 = vmatprep.subr.bf16.mxu0 0
        %904 = vmatpush1.bf16.msra.mxu0 0
        %905 = vmatprep.subr.bf16.mxu0 0
        %906 = vmatpush1.bf16.msra.mxu0 0
        %907 = vmatprep.subr.bf16.mxu0 0
        %908 = vmatpush1.bf16.msra.mxu0 0
        %909 = vmatprep.mubr.bf16.mxu0 0
        %910 = vmatmul.mubr.bf16.gmra.mrb[0].mxu0 %v636
        %v911 = vpop.f32.mrb[0].mxu0
        %v912 = vadd.f32 %v871, %v911
        %v913 = vpop.f32.mrb[0].mxu0
        %v914 = vpop.f32.mrb[0].mxu0
        %v915 = vadd.f32 %v874, %v914
        %v916 = vpop.f32.mrb[0].mxu0
        %917 = vdwg.mxu0
        %v918 = vmax.f32 %v912, 0.0
        %v919 = vmax.f32 %v915, 0.0
        %v920 = vrot.slane %v918, 7
        %v921 = vrot.slane %v919, 7
        %v922 = vsel %vm602, %v920, %v921
        %v923 = vsel %vm602, %v921, %v920
        %v924 = vmul.f32 %v923, %v608
        %v925 = vmul.f32 %v922, %v613
        %v926 = vrot.slane %v918, 1
        %v927 = vrot.slane %v919, 1
        %v928 = vsel %vm619, %v926, %v927
        %v929 = vsel %vm619, %v927, %v926
        %v930 = vmul.f32 %v928, %v625
        %v931 = vmul.f32 %v929, %v630
        %v932 = vpack.c.bf16 %v925, %v924
        %v933 = vpack.c.bf16 %v919, %v918
        %v934 = vpack.c.bf16 %v931, %v930
        %v935 = vld [vmem:[#allocation8] sm:$0xf]
        %v936 = vld [vmem:[#allocation8 + $0x4] sm:$0xf]
        %v937 = vld [vmem:[#allocation8 + $0x8] sm:$0xf]
        %v938 = vld [vmem:[#allocation8 + $0xc] sm:$0xf]
        %v939 = vld [vmem:[#allocation8 + $0x10] sm:$0xf]
        %v940 = vld [vmem:[#allocation8 + $0x14] sm:$0xf]
        %v941 = vld [vmem:[#allocation8 + $0x18] sm:$0xf]
        %v942 = vld [vmem:[#allocation8 + $0x1c] sm:$0xf]
        %v943 = vld [vmem:[#allocation8 + $0x20] sm:$0xf]
        %v944 = vld [vmem:[#allocation8 + $0x24] sm:$0xf]
        %v945 = vld [vmem:[#allocation8 + $0x28] sm:$0xf]
        %v946 = vld [vmem:[#allocation8 + $0x2c] sm:$0xf]
        %v947 = vld [vmem:[#allocation8 + $0x30] sm:$0xf]
        %v948 = vld [vmem:[#allocation8 + $0x34] sm:$0xf]
        %v949 = vld [vmem:[#allocation8 + $0x38] sm:$0xf]
        %v950 = vld [vmem:[#allocation8 + $0x3c] sm:$0xf]
        %v951 = vld [vmem:[#allocation8 + $0x40] sm:$0xf]
        %v952 = vld [vmem:[#allocation8 + $0x44] sm:$0xf]
        %v953 = vld [vmem:[#allocation8 + $0x48] sm:$0xf]
        %v954 = vld [vmem:[#allocation8 + $0x4c] sm:$0xf]
        %v955 = vld [vmem:[#allocation8 + $0x50] sm:$0xf]
        %v956 = vld [vmem:[#allocation8 + $0x54] sm:$0xf]
        %v957 = vld [vmem:[#allocation8 + $0x58] sm:$0xf]
        %v958 = vld [vmem:[#allocation8 + $0x5c] sm:$0xf]
        %v959 = vld [vmem:[#allocation8 + $0x60] sm:$0xf]
        %v960 = vld [vmem:[#allocation8 + $0x64] sm:$0xf]
        %v961 = vld [vmem:[#allocation8 + $0x68] sm:$0xf]
        %v962 = vld [vmem:[#allocation8 + $0x6c] sm:$0xf]
        %v963 = vld [vmem:[#allocation8 + $0x70] sm:$0xf]
        %v964 = vld [vmem:[#allocation8 + $0x74] sm:$0xf]
        %v965 = vld [vmem:[#allocation8 + $0x78] sm:$0xf]
        %v966 = vld [vmem:[#allocation8 + $0x7c] sm:$0xf]
        %v967 = vld [vmem:[#allocation8 + $0x80] sm:$0xf]
        %v968 = vld [vmem:[#allocation8 + $0x84] sm:$0xf]
        %v969 = vld [vmem:[#allocation8 + $0x88] sm:$0xf]
        %v970 = vld [vmem:[#allocation8 + $0x8c] sm:$0xf]
        %v971 = vld [vmem:[#allocation8 + $0x90] sm:$0xf]
        %v972 = vld [vmem:[#allocation8 + $0x94] sm:$0xf]
        %v973 = vld [vmem:[#allocation8 + $0x98] sm:$0xf]
        %v974 = vld [vmem:[#allocation8 + $0x9c] sm:$0xf]
        %v975 = vld [vmem:[#allocation8 + $0xa0] sm:$0xf]
        %v976 = vld [vmem:[#allocation8 + $0xa4] sm:$0xf]
        %v977 = vld [vmem:[#allocation8 + $0xa8] sm:$0xf]
        %v978 = vld [vmem:[#allocation8 + $0xac] sm:$0xf]
        %v979 = vld [vmem:[#allocation8 + $0xb0] sm:$0xf]
        %v980 = vld [vmem:[#allocation8 + $0xb4] sm:$0xf]
        %v981 = vld [vmem:[#allocation8 + $0xb8] sm:$0xf]
        %v982 = vld [vmem:[#allocation8 + $0xbc] sm:$0xf]
        %v983 = vld [vmem:[%s7] sm:$0x1]
        %v985 = vlaneseq
        %v986 = vshrl.u32 %v985, 7
        %v987 = vsub.s32 0, %v986
        %v988 = vrot.slane %v983, %v987
        %v1038 = vunpack.c.l.b16 %v935
        %v1039 = vunpack.c.l.b16 %v936
        %v1040 = vunpack.c.l.b16 %v937
        %v1041 = vunpack.c.l.b16 %v938
        %v1042 = vunpack.c.l.b16 %v939
        %v1043 = vunpack.c.l.b16 %v940
        %v1044 = vunpack.c.l.b16 %v941
        %v1045 = vunpack.c.l.b16 %v942
        %v1046 = vunpack.c.l.b16 %v943
        %v1047 = vunpack.c.l.b16 %v944
        %v1048 = vunpack.c.l.b16 %v945
        %v1049 = vunpack.c.l.b16 %v946
        %v1050 = vunpack.c.l.b16 %v947
        %v1051 = vunpack.c.l.b16 %v948
        %v1052 = vunpack.c.l.b16 %v949
        %v1053 = vunpack.c.l.b16 %v950
        %v1054 = vunpack.c.l.b16 %v951
        %v1055 = vunpack.c.l.b16 %v952
        %v1056 = vunpack.c.l.b16 %v953
        %v1057 = vunpack.c.l.b16 %v954
        %v1058 = vunpack.c.l.b16 %v955
        %v1059 = vunpack.c.l.b16 %v956
        %v1060 = vunpack.c.l.b16 %v957
        %v1061 = vunpack.c.l.b16 %v958
        %v1062 = vunpack.c.l.b16 %v959
        %v1063 = vunpack.c.l.b16 %v960
        %v1064 = vunpack.c.l.b16 %v961
        %v1065 = vunpack.c.l.b16 %v962
        %v1066 = vunpack.c.l.b16 %v963
        %v1067 = vunpack.c.l.b16 %v964
        %v1068 = vunpack.c.l.b16 %v965
        %v1069 = vunpack.c.l.b16 %v966
        %v1070 = vunpack.c.l.b16 %v967
        %v1071 = vunpack.c.l.b16 %v968
        %v1072 = vunpack.c.l.b16 %v969
        %v1073 = vunpack.c.l.b16 %v970
        %v1074 = vunpack.c.l.b16 %v971
        %v1075 = vunpack.c.l.b16 %v972
        %v1076 = vunpack.c.l.b16 %v973
        %v1077 = vunpack.c.l.b16 %v974
        %v1078 = vunpack.c.l.b16 %v975
        %v1079 = vunpack.c.l.b16 %v976
        %v1080 = vunpack.c.l.b16 %v977
        %v1081 = vunpack.c.l.b16 %v978
        %v1082 = vunpack.c.l.b16 %v979
        %v1083 = vunpack.c.l.b16 %v980
        %v1084 = vunpack.c.l.b16 %v981
        %v1085 = vunpack.c.l.b16 %v982
        %v1086 = vpack.c.b16 %v1039, %v1038
        %v1087 = vpack.c.b16 %v1041, %v1040
        %v1088 = vpack.c.b16 %v1043, %v1042
        %v1089 = vpack.c.b16 %v1045, %v1044
        %v1090 = vpack.c.b16 %v1047, %v1046
        %v1091 = vpack.c.b16 %v1049, %v1048
        %v1092 = vpack.c.b16 %v1051, %v1050
        %v1093 = vpack.c.b16 %v1053, %v1052
        %v1094 = vpack.c.b16 %v1055, %v1054
        %v1095 = vpack.c.b16 %v1057, %v1056
        %v1096 = vpack.c.b16 %v1059, %v1058
        %v1097 = vpack.c.b16 %v1061, %v1060
        %v1098 = vpack.c.b16 %v1063, %v1062
        %v1099 = vpack.c.b16 %v1065, %v1064
        %v1100 = vpack.c.b16 %v1067, %v1066
        %v1101 = vpack.c.b16 %v1069, %v1068
        %v1102 = vpack.c.b16 %v1071, %v1070
        %v1103 = vpack.c.b16 %v1073, %v1072
        %v1104 = vpack.c.b16 %v1075, %v1074
        %v1105 = vpack.c.b16 %v1077, %v1076
        %v1106 = vpack.c.b16 %v1079, %v1078
        %v1107 = vpack.c.b16 %v1081, %v1080
        %v1108 = vpack.c.b16 %v1083, %v1082
        %v1109 = vpack.c.b16 %v1085, %v1084
        %1134 = vmatprep.subr.bf16.mxu0 0
        %1135 = vmatpush1.bf16.msra.mxu0 %v1086
        %1136 = vmatprep.subr.bf16.mxu0 0
        %1137 = vmatpush1.bf16.msra.mxu0 %v1087
        %1138 = vmatprep.subr.bf16.mxu0 0
        %1139 = vmatpush1.bf16.msra.mxu0 %v1088
        %1140 = vmatprep.subr.bf16.mxu0 0
        %1141 = vmatpush1.bf16.msra.mxu0 %v1089
        %1142 = vmatprep.subr.bf16.mxu0 0
        %1143 = vmatpush1.bf16.msra.mxu0 %v1090
        %1144 = vmatprep.subr.bf16.mxu0 0
        %1145 = vmatpush1.bf16.msra.mxu0 %v1091
        %1146 = vmatprep.subr.bf16.mxu0 0
        %1147 = vmatpush1.bf16.msra.mxu0 %v1092
        %1148 = vmatprep.subr.bf16.mxu0 0
        %1149 = vmatpush1.bf16.msra.mxu0 %v1093
        %1150 = vmatprep.subr.bf16.mxu0 0
        %1151 = vmatpush1.bf16.msra.mxu0 %v1094
        %1152 = vmatprep.subr.bf16.mxu0 0
        %1153 = vmatpush1.bf16.msra.mxu0 %v1095
        %1154 = vmatprep.subr.bf16.mxu0 0
        %1155 = vmatpush1.bf16.msra.mxu0 %v1096
        %1156 = vmatprep.subr.bf16.mxu0 0
        %1157 = vmatpush1.bf16.msra.mxu0 %v1097
        %1158 = vmatprep.subr.bf16.mxu0 0
        %1159 = vmatpush1.bf16.msra.mxu0 %v1098
        %1160 = vmatprep.subr.bf16.mxu0 0
        %1161 = vmatpush1.bf16.msra.mxu0 %v1099
        %1162 = vmatprep.subr.bf16.mxu0 0
        %1163 = vmatpush1.bf16.msra.mxu0 %v1100
        %1164 = vmatprep.subr.bf16.mxu0 0
        %1165 = vmatpush1.bf16.msra.mxu0 %v1101
        %1166 = vmatprep.mubr.bf16.mxu0 %v933
        %1167 = vmatmul.mubr.bf16.gmra.mrb[0].mxu0 %v932
        %v1168 = vpop.f32.mrb[0].mxu0
        %v1169 = vadd.f32 %v988, %v1168
        %v1170 = vpop.f32.mrb[0].mxu0
        %v1171 = vpop.f32.mrb[0].mxu0
        %v1172 = vadd.f32 %v988, %v1171
        %v1173 = vpop.f32.mrb[0].mxu0
        %1174 = vdwg.mxu0
        %1175 = vmatprep.subr.bf16.mxu0 0
        %1176 = vmatpush1.bf16.msra.mxu0 %v1102
        %1177 = vmatprep.subr.bf16.mxu0 0
        %1178 = vmatpush1.bf16.msra.mxu0 %v1103
        %1179 = vmatprep.subr.bf16.mxu0 0
        %1180 = vmatpush1.bf16.msra.mxu0 %v1104
        %1181 = vmatprep.subr.bf16.mxu0 0
        %1182 = vmatpush1.bf16.msra.mxu0 %v1105
        %1183 = vmatprep.subr.bf16.mxu0 0
        %1184 = vmatpush1.bf16.msra.mxu0 %v1106
        %1185 = vmatprep.subr.bf16.mxu0 0
        %1186 = vmatpush1.bf16.msra.mxu0 %v1107
        %1187 = vmatprep.subr.bf16.mxu0 0
        %1188 = vmatpush1.bf16.msra.mxu0 %v1108
        %1189 = vmatprep.subr.bf16.mxu0 0
        %1190 = vmatpush1.bf16.msra.mxu0 %v1109
        %1191 = vmatprep.subr.bf16.mxu0 0
        %1192 = vmatpush1.bf16.msra.mxu0 0
        %1193 = vmatprep.subr.bf16.mxu0 0
        %1194 = vmatpush1.bf16.msra.mxu0 0
        %1195 = vmatprep.subr.bf16.mxu0 0
        %1196 = vmatpush1.bf16.msra.mxu0 0
        %1197 = vmatprep.subr.bf16.mxu0 0
        %1198 = vmatpush1.bf16.msra.mxu0 0
        %1199 = vmatprep.subr.bf16.mxu0 0
        %1200 = vmatpush1.bf16.msra.mxu0 0
        %1201 = vmatprep.subr.bf16.mxu0 0
        %1202 = vmatpush1.bf16.msra.mxu0 0
        %1203 = vmatprep.subr.bf16.mxu0 0
        %1204 = vmatpush1.bf16.msra.mxu0 0
        %1205 = vmatprep.subr.bf16.mxu0 0
        %1206 = vmatpush1.bf16.msra.mxu0 0
        %1207 = vmatprep.mubr.bf16.mxu0 0
        %1208 = vmatmul.mubr.bf16.gmra.mrb[0].mxu0 %v934
        %v1209 = vpop.f32.mrb[0].mxu0
        %v1210 = vadd.f32 %v1169, %v1209
        %v1211 = vpop.f32.mrb[0].mxu0
        %v1212 = vpop.f32.mrb[0].mxu0
        %v1213 = vadd.f32 %v1172, %v1212
        %v1214 = vpop.f32.mrb[0].mxu0
        %1215 = vdwg.mxu0
        %v1216 = vadd.f32 %v594, %v1210
        %v1217 = vadd.f32 %v595, %v1213
        %v1218 = vadd.f32 %v592, %v1216
        %v1219 = vadd.f32 %v593, %v1217
        %v1220 = vmax.f32 %v1218, 0.0
        %v1221 = vmax.f32 %v1219, 0.0
        %v1222 = vrot.slane %v1220, 7
        %v1223 = vrot.slane %v1221, 7
        %v1224 = vsel %vm602, %v1222, %v1223
        %v1225 = vsel %vm602, %v1223, %v1222
        %v1226 = vmul.f32 %v1225, %v608
        %v1227 = vmul.f32 %v1224, %v613
        %v1228 = vrot.slane %v1220, 1
        %v1229 = vrot.slane %v1221, 1
        %v1230 = vsel %vm619, %v1228, %v1229
        %v1231 = vsel %vm619, %v1229, %v1228
        %v1232 = vmul.f32 %v1230, %v625
        %v1233 = vmul.f32 %v1231, %v630
        %v1234 = vpack.c.bf16 %v1227, %v1226
        %v1235 = vpack.c.bf16 %v1221, %v1220
        %v1236 = vpack.c.bf16 %v1233, %v1232
        %v1237 = vld [vmem:[#allocation10] sm:$0xf]
        %v1238 = vld [vmem:[#allocation10 + $0x4] sm:$0xf]
        %v1239 = vld [vmem:[#allocation10 + $0x8] sm:$0xf]
        %v1240 = vld [vmem:[#allocation10 + $0xc] sm:$0xf]
        %v1241 = vld [vmem:[#allocation10 + $0x10] sm:$0xf]
        %v1242 = vld [vmem:[#allocation10 + $0x14] sm:$0xf]
        %v1243 = vld [vmem:[#allocation10 + $0x18] sm:$0xf]
        %v1244 = vld [vmem:[#allocation10 + $0x1c] sm:$0xf]
        %v1245 = vld [vmem:[#allocation10 + $0x20] sm:$0xf]
        %v1246 = vld [vmem:[#allocation10 + $0x24] sm:$0xf]
        %v1247 = vld [vmem:[#allocation10 + $0x28] sm:$0xf]
        %v1248 = vld [vmem:[#allocation10 + $0x2c] sm:$0xf]
        %v1249 = vld [vmem:[#allocation10 + $0x30] sm:$0xf]
        %v1250 = vld [vmem:[#allocation10 + $0x34] sm:$0xf]
        %v1251 = vld [vmem:[#allocation10 + $0x38] sm:$0xf]
        %v1252 = vld [vmem:[#allocation10 + $0x3c] sm:$0xf]
        %v1253 = vld [vmem:[#allocation10 + $0x40] sm:$0xf]
        %v1254 = vld [vmem:[#allocation10 + $0x44] sm:$0xf]
        %v1255 = vld [vmem:[#allocation10 + $0x48] sm:$0xf]
        %v1256 = vld [vmem:[#allocation10 + $0x4c] sm:$0xf]
        %v1257 = vld [vmem:[#allocation10 + $0x50] sm:$0xf]
        %v1258 = vld [vmem:[#allocation10 + $0x54] sm:$0xf]
        %v1259 = vld [vmem:[#allocation10 + $0x58] sm:$0xf]
        %v1260 = vld [vmem:[#allocation10 + $0x5c] sm:$0xf]
        %v1261 = vld [vmem:[#allocation10 + $0x60] sm:$0xf]
        %v1262 = vld [vmem:[#allocation10 + $0x64] sm:$0xf]
        %v1263 = vld [vmem:[#allocation10 + $0x68] sm:$0xf]
        %v1264 = vld [vmem:[#allocation10 + $0x6c] sm:$0xf]
        %v1265 = vld [vmem:[#allocation10 + $0x70] sm:$0xf]
        %v1266 = vld [vmem:[#allocation10 + $0x74] sm:$0xf]
        %v1267 = vld [vmem:[#allocation10 + $0x78] sm:$0xf]
        %v1268 = vld [vmem:[#allocation10 + $0x7c] sm:$0xf]
        %v1269 = vld [vmem:[#allocation10 + $0x80] sm:$0xf]
        %v1270 = vld [vmem:[#allocation10 + $0x84] sm:$0xf]
        %v1271 = vld [vmem:[#allocation10 + $0x88] sm:$0xf]
        %v1272 = vld [vmem:[#allocation10 + $0x8c] sm:$0xf]
        %v1273 = vld [vmem:[#allocation10 + $0x90] sm:$0xf]
        %v1274 = vld [vmem:[#allocation10 + $0x94] sm:$0xf]
        %v1275 = vld [vmem:[#allocation10 + $0x98] sm:$0xf]
        %v1276 = vld [vmem:[#allocation10 + $0x9c] sm:$0xf]
        %v1277 = vld [vmem:[#allocation10 + $0xa0] sm:$0xf]
        %v1278 = vld [vmem:[#allocation10 + $0xa4] sm:$0xf]
        %v1279 = vld [vmem:[#allocation10 + $0xa8] sm:$0xf]
        %v1280 = vld [vmem:[#allocation10 + $0xac] sm:$0xf]
        %v1281 = vld [vmem:[#allocation10 + $0xb0] sm:$0xf]
        %v1282 = vld [vmem:[#allocation10 + $0xb4] sm:$0xf]
        %v1283 = vld [vmem:[#allocation10 + $0xb8] sm:$0xf]
        %v1284 = vld [vmem:[#allocation10 + $0xbc] sm:$0xf]
        %v1285 = vld [vmem:[%s9] sm:$0x1]
        %v1287 = vlaneseq
        %v1288 = vshrl.u32 %v1287, 7
        %v1289 = vsub.s32 0, %v1288
        %v1290 = vrot.slane %v1285, %v1289
        %v1340 = vunpack.c.l.b16 %v1237
        %v1341 = vunpack.c.l.b16 %v1238
        %v1342 = vunpack.c.l.b16 %v1239
        %v1343 = vunpack.c.l.b16 %v1240
        %v1344 = vunpack.c.l.b16 %v1241
        %v1345 = vunpack.c.l.b16 %v1242
        %v1346 = vunpack.c.l.b16 %v1243
        %v1347 = vunpack.c.l.b16 %v1244
        %v1348 = vunpack.c.l.b16 %v1245
        %v1349 = vunpack.c.l.b16 %v1246
        %v1350 = vunpack.c.l.b16 %v1247
        %v1351 = vunpack.c.l.b16 %v1248
        %v1352 = vunpack.c.l.b16 %v1249
        %v1353 = vunpack.c.l.b16 %v1250
        %v1354 = vunpack.c.l.b16 %v1251
        %v1355 = vunpack.c.l.b16 %v1252
        %v1356 = vunpack.c.l.b16 %v1253
        %v1357 = vunpack.c.l.b16 %v1254
        %v1358 = vunpack.c.l.b16 %v1255
        %v1359 = vunpack.c.l.b16 %v1256
        %v1360 = vunpack.c.l.b16 %v1257
        %v1361 = vunpack.c.l.b16 %v1258
        %v1362 = vunpack.c.l.b16 %v1259
        %v1363 = vunpack.c.l.b16 %v1260
        %v1364 = vunpack.c.l.b16 %v1261
        %v1365 = vunpack.c.l.b16 %v1262
        %v1366 = vunpack.c.l.b16 %v1263
        %v1367 = vunpack.c.l.b16 %v1264
        %v1368 = vunpack.c.l.b16 %v1265
        %v1369 = vunpack.c.l.b16 %v1266
        %v1370 = vunpack.c.l.b16 %v1267
        %v1371 = vunpack.c.l.b16 %v1268
        %v1372 = vunpack.c.l.b16 %v1269
        %v1373 = vunpack.c.l.b16 %v1270
        %v1374 = vunpack.c.l.b16 %v1271
        %v1375 = vunpack.c.l.b16 %v1272
        %v1376 = vunpack.c.l.b16 %v1273
        %v1377 = vunpack.c.l.b16 %v1274
        %v1378 = vunpack.c.l.b16 %v1275
        %v1379 = vunpack.c.l.b16 %v1276
        %v1380 = vunpack.c.l.b16 %v1277
        %v1381 = vunpack.c.l.b16 %v1278
        %v1382 = vunpack.c.l.b16 %v1279
        %v1383 = vunpack.c.l.b16 %v1280
        %v1384 = vunpack.c.l.b16 %v1281
        %v1385 = vunpack.c.l.b16 %v1282
        %v1386 = vunpack.c.l.b16 %v1283
        %v1387 = vunpack.c.l.b16 %v1284
        %v1388 = vpack.c.b16 %v1341, %v1340
        %v1389 = vpack.c.b16 %v1343, %v1342
        %v1390 = vpack.c.b16 %v1345, %v1344
        %v1391 = vpack.c.b16 %v1347, %v1346
        %v1392 = vpack.c.b16 %v1349, %v1348
        %v1393 = vpack.c.b16 %v1351, %v1350
        %v1394 = vpack.c.b16 %v1353, %v1352
        %v1395 = vpack.c.b16 %v1355, %v1354
        %v1396 = vpack.c.b16 %v1357, %v1356
        %v1397 = vpack.c.b16 %v1359, %v1358
        %v1398 = vpack.c.b16 %v1361, %v1360
        %v1399 = vpack.c.b16 %v1363, %v1362
        %v1400 = vpack.c.b16 %v1365, %v1364
        %v1401 = vpack.c.b16 %v1367, %v1366
        %v1402 = vpack.c.b16 %v1369, %v1368
        %v1403 = vpack.c.b16 %v1371, %v1370
        %v1404 = vpack.c.b16 %v1373, %v1372
        %v1405 = vpack.c.b16 %v1375, %v1374
        %v1406 = vpack.c.b16 %v1377, %v1376
        %v1407 = vpack.c.b16 %v1379, %v1378
        %v1408 = vpack.c.b16 %v1381, %v1380
        %v1409 = vpack.c.b16 %v1383, %v1382
        %v1410 = vpack.c.b16 %v1385, %v1384
        %v1411 = vpack.c.b16 %v1387, %v1386
        %1436 = vmatprep.subr.bf16.mxu0 0
        %1437 = vmatpush1.bf16.msra.mxu0 %v1388
        %1438 = vmatprep.subr.bf16.mxu0 0
        %1439 = vmatpush1.bf16.msra.mxu0 %v1389
        %1440 = vmatprep.subr.bf16.mxu0 0
        %1441 = vmatpush1.bf16.msra.mxu0 %v1390
        %1442 = vmatprep.subr.bf16.mxu0 0
        %1443 = vmatpush1.bf16.msra.mxu0 %v1391
        %1444 = vmatprep.subr.bf16.mxu0 0
        %1445 = vmatpush1.bf16.msra.mxu0 %v1392
        %1446 = vmatprep.subr.bf16.mxu0 0
        %1447 = vmatpush1.bf16.msra.mxu0 %v1393
        %1448 = vmatprep.subr.bf16.mxu0 0
        %1449 = vmatpush1.bf16.msra.mxu0 %v1394
        %1450 = vmatprep.subr.bf16.mxu0 0
        %1451 = vmatpush1.bf16.msra.mxu0 %v1395
        %1452 = vmatprep.subr.bf16.mxu0 0
        %1453 = vmatpush1.bf16.msra.mxu0 %v1396
        %1454 = vmatprep.subr.bf16.mxu0 0
        %1455 = vmatpush1.bf16.msra.mxu0 %v1397
        %1456 = vmatprep.subr.bf16.mxu0 0
        %1457 = vmatpush1.bf16.msra.mxu0 %v1398
        %1458 = vmatprep.subr.bf16.mxu0 0
        %1459 = vmatpush1.bf16.msra.mxu0 %v1399
        %1460 = vmatprep.subr.bf16.mxu0 0
        %1461 = vmatpush1.bf16.msra.mxu0 %v1400
        %1462 = vmatprep.subr.bf16.mxu0 0
        %1463 = vmatpush1.bf16.msra.mxu0 %v1401
        %1464 = vmatprep.subr.bf16.mxu0 0
        %1465 = vmatpush1.bf16.msra.mxu0 %v1402
        %1466 = vmatprep.subr.bf16.mxu0 0
        %1467 = vmatpush1.bf16.msra.mxu0 %v1403
        %1468 = vmatprep.mubr.bf16.mxu0 %v1235
        %1469 = vmatmul.mubr.bf16.gmra.mrb[0].mxu0 %v1234
        %v1470 = vpop.f32.mrb[0].mxu0
        %v1471 = vadd.f32 %v1290, %v1470
        %v1472 = vpop.f32.mrb[0].mxu0
        %v1473 = vpop.f32.mrb[0].mxu0
        %v1474 = vadd.f32 %v1290, %v1473
        %v1475 = vpop.f32.mrb[0].mxu0
        %1476 = vdwg.mxu0
        %1477 = vmatprep.subr.bf16.mxu0 0
        %1478 = vmatpush1.bf16.msra.mxu0 %v1404
        %1479 = vmatprep.subr.bf16.mxu0 0
        %1480 = vmatpush1.bf16.msra.mxu0 %v1405
        %1481 = vmatprep.subr.bf16.mxu0 0
        %1482 = vmatpush1.bf16.msra.mxu0 %v1406
        %1483 = vmatprep.subr.bf16.mxu0 0
        %1484 = vmatpush1.bf16.msra.mxu0 %v1407
        %1485 = vmatprep.subr.bf16.mxu0 0
        %1486 = vmatpush1.bf16.msra.mxu0 %v1408
        %1487 = vmatprep.subr.bf16.mxu0 0
        %1488 = vmatpush1.bf16.msra.mxu0 %v1409
        %1489 = vmatprep.subr.bf16.mxu0 0
        %1490 = vmatpush1.bf16.msra.mxu0 %v1410
        %1491 = vmatprep.subr.bf16.mxu0 0
        %1492 = vmatpush1.bf16.msra.mxu0 %v1411
        %1493 = vmatprep.subr.bf16.mxu0 0
        %1494 = vmatpush1.bf16.msra.mxu0 0
        %1495 = vmatprep.subr.bf16.mxu0 0
        %1496 = vmatpush1.bf16.msra.mxu0 0
        %1497 = vmatprep.subr.bf16.mxu0 0
        %1498 = vmatpush1.bf16.msra.mxu0 0
        %1499 = vmatprep.subr.bf16.mxu0 0
        %1500 = vmatpush1.bf16.msra.mxu0 0
        %1501 = vmatprep.subr.bf16.mxu0 0
        %1502 = vmatpush1.bf16.msra.mxu0 0
        %1503 = vmatprep.subr.bf16.mxu0 0
        %1504 = vmatpush1.bf16.msra.mxu0 0
        %1505 = vmatprep.subr.bf16.mxu0 0
        %1506 = vmatpush1.bf16.msra.mxu0 0
        %1507 = vmatprep.subr.bf16.mxu0 0
        %1508 = vmatpush1.bf16.msra.mxu0 0
        %1509 = vmatprep.mubr.bf16.mxu0 0
        %1510 = vmatmul.mubr.bf16.gmra.mrb[0].mxu0 %v1236
        %v1511 = vpop.f32.mrb[0].mxu0
        %v1512 = vadd.f32 %v1471, %v1511
        %v1513 = vpop.f32.mrb[0].mxu0
        %v1514 = vpop.f32.mrb[0].mxu0
        %v1515 = vadd.f32 %v1474, %v1514
        %v1516 = vpop.f32.mrb[0].mxu0
        %1517 = vdwg.mxu0
        %v1518 = vmax.f32 %v1512, 0.0
        %v1519 = vmax.f32 %v1515, 0.0
        %v1520 = vrot.slane %v1518, 7
        %v1521 = vrot.slane %v1519, 7
        %v1522 = vsel %vm602, %v1520, %v1521
        %v1523 = vsel %vm602, %v1521, %v1520
        %v1524 = vmul.f32 %v1523, %v608
        %v1525 = vmul.f32 %v1522, %v613
        %v1526 = vrot.slane %v1518, 1
        %v1527 = vrot.slane %v1519, 1
        %v1528 = vsel %vm619, %v1526, %v1527
        %v1529 = vsel %vm619, %v1527, %v1526
        %v1530 = vmul.f32 %v1528, %v625
        %v1531 = vmul.f32 %v1529, %v630
        %v1532 = vpack.c.bf16 %v1525, %v1524
        %v1533 = vpack.c.bf16 %v1519, %v1518
        %v1534 = vpack.c.bf16 %v1531, %v1530
        %v1535 = vld [vmem:[#allocation11] sm:$0xf]
        %v1536 = vld [vmem:[#allocation11 + $0x4] sm:$0xf]
        %v1537 = vld [vmem:[#allocation11 + $0x8] sm:$0xf]
        %v1538 = vld [vmem:[#allocation11 + $0xc] sm:$0xf]
        %v1539 = vld [vmem:[#allocation11 + $0x10] sm:$0xf]
        %v1540 = vld [vmem:[#allocation11 + $0x14] sm:$0xf]
        %v1541 = vld [vmem:[#allocation11 + $0x18] sm:$0xf]
        %v1542 = vld [vmem:[#allocation11 + $0x1c] sm:$0xf]
        %v1543 = vld [vmem:[#allocation11 + $0x20] sm:$0xf]
        %v1544 = vld [vmem:[#allocation11 + $0x24] sm:$0xf]
        %v1545 = vld [vmem:[#allocation11 + $0x28] sm:$0xf]
        %v1546 = vld [vmem:[#allocation11 + $0x2c] sm:$0xf]
        %v1547 = vld [vmem:[#allocation11 + $0x30] sm:$0xf]
        %v1548 = vld [vmem:[#allocation11 + $0x34] sm:$0xf]
        %v1549 = vld [vmem:[#allocation11 + $0x38] sm:$0xf]
        %v1550 = vld [vmem:[#allocation11 + $0x3c] sm:$0xf]
        %v1551 = vld [vmem:[#allocation11 + $0x40] sm:$0xf]
        %v1552 = vld [vmem:[#allocation11 + $0x44] sm:$0xf]
        %v1553 = vld [vmem:[#allocation11 + $0x48] sm:$0xf]
        %v1554 = vld [vmem:[#allocation11 + $0x4c] sm:$0xf]
        %v1555 = vld [vmem:[#allocation11 + $0x50] sm:$0xf]
        %v1556 = vld [vmem:[#allocation11 + $0x54] sm:$0xf]
        %v1557 = vld [vmem:[#allocation11 + $0x58] sm:$0xf]
        %v1558 = vld [vmem:[#allocation11 + $0x5c] sm:$0xf]
        %v1559 = vld [vmem:[#allocation11 + $0x60] sm:$0xf]
        %v1560 = vld [vmem:[#allocation11 + $0x64] sm:$0xf]
        %v1561 = vld [vmem:[#allocation11 + $0x68] sm:$0xf]
        %v1562 = vld [vmem:[#allocation11 + $0x6c] sm:$0xf]
        %v1563 = vld [vmem:[#allocation11 + $0x70] sm:$0xf]
        %v1564 = vld [vmem:[#allocation11 + $0x74] sm:$0xf]
        %v1565 = vld [vmem:[#allocation11 + $0x78] sm:$0xf]
        %v1566 = vld [vmem:[#allocation11 + $0x7c] sm:$0xf]
        %v1567 = vld [vmem:[#allocation11 + $0x80] sm:$0xf]
        %v1568 = vld [vmem:[#allocation11 + $0x84] sm:$0xf]
        %v1569 = vld [vmem:[#allocation11 + $0x88] sm:$0xf]
        %v1570 = vld [vmem:[#allocation11 + $0x8c] sm:$0xf]
        %v1571 = vld [vmem:[#allocation11 + $0x90] sm:$0xf]
        %v1572 = vld [vmem:[#allocation11 + $0x94] sm:$0xf]
        %v1573 = vld [vmem:[#allocation11 + $0x98] sm:$0xf]
        %v1574 = vld [vmem:[#allocation11 + $0x9c] sm:$0xf]
        %v1575 = vld [vmem:[#allocation11 + $0xa0] sm:$0xf]
        %v1576 = vld [vmem:[#allocation11 + $0xa4] sm:$0xf]
        %v1577 = vld [vmem:[#allocation11 + $0xa8] sm:$0xf]
        %v1578 = vld [vmem:[#allocation11 + $0xac] sm:$0xf]
        %v1579 = vld [vmem:[#allocation11 + $0xb0] sm:$0xf]
        %v1580 = vld [vmem:[#allocation11 + $0xb4] sm:$0xf]
        %v1581 = vld [vmem:[#allocation11 + $0xb8] sm:$0xf]
        %v1582 = vld [vmem:[#allocation11 + $0xbc] sm:$0xf]
        %v1583 = vld [vmem:[%s11] sm:$0x1]
        %v1585 = vlaneseq
        %v1586 = vshrl.u32 %v1585, 7
        %v1587 = vsub.s32 0, %v1586
        %v1588 = vrot.slane %v1583, %v1587
        %v1638 = vunpack.c.l.b16 %v1535
        %v1639 = vunpack.c.l.b16 %v1536
        %v1640 = vunpack.c.l.b16 %v1537
        %v1641 = vunpack.c.l.b16 %v1538
        %v1642 = vunpack.c.l.b16 %v1539
        %v1643 = vunpack.c.l.b16 %v1540
        %v1644 = vunpack.c.l.b16 %v1541
        %v1645 = vunpack.c.l.b16 %v1542
        %v1646 = vunpack.c.l.b16 %v1543
        %v1647 = vunpack.c.l.b16 %v1544
        %v1648 = vunpack.c.l.b16 %v1545
        %v1649 = vunpack.c.l.b16 %v1546
        %v1650 = vunpack.c.l.b16 %v1547
        %v1651 = vunpack.c.l.b16 %v1548
        %v1652 = vunpack.c.l.b16 %v1549
        %v1653 = vunpack.c.l.b16 %v1550
        %v1654 = vunpack.c.l.b16 %v1551
        %v1655 = vunpack.c.l.b16 %v1552
        %v1656 = vunpack.c.l.b16 %v1553
        %v1657 = vunpack.c.l.b16 %v1554
        %v1658 = vunpack.c.l.b16 %v1555
        %v1659 = vunpack.c.l.b16 %v1556
        %v1660 = vunpack.c.l.b16 %v1557
        %v1661 = vunpack.c.l.b16 %v1558
        %v1662 = vunpack.c.l.b16 %v1559
        %v1663 = vunpack.c.l.b16 %v1560
        %v1664 = vunpack.c.l.b16 %v1561
        %v1665 = vunpack.c.l.b16 %v1562
        %v1666 = vunpack.c.l.b16 %v1563
        %v1667 = vunpack.c.l.b16 %v1564
        %v1668 = vunpack.c.l.b16 %v1565
        %v1669 = vunpack.c.l.b16 %v1566
        %v1670 = vunpack.c.l.b16 %v1567
        %v1671 = vunpack.c.l.b16 %v1568
        %v1672 = vunpack.c.l.b16 %v1569
        %v1673 = vunpack.c.l.b16 %v1570
        %v1674 = vunpack.c.l.b16 %v1571
        %v1675 = vunpack.c.l.b16 %v1572
        %v1676 = vunpack.c.l.b16 %v1573
        %v1677 = vunpack.c.l.b16 %v1574
        %v1678 = vunpack.c.l.b16 %v1575
        %v1679 = vunpack.c.l.b16 %v1576
        %v1680 = vunpack.c.l.b16 %v1577
        %v1681 = vunpack.c.l.b16 %v1578
        %v1682 = vunpack.c.l.b16 %v1579
        %v1683 = vunpack.c.l.b16 %v1580
        %v1684 = vunpack.c.l.b16 %v1581
        %v1685 = vunpack.c.l.b16 %v1582
        %v1686 = vpack.c.b16 %v1639, %v1638
        %v1687 = vpack.c.b16 %v1641, %v1640
        %v1688 = vpack.c.b16 %v1643, %v1642
        %v1689 = vpack.c.b16 %v1645, %v1644
        %v1690 = vpack.c.b16 %v1647, %v1646
        %v1691 = vpack.c.b16 %v1649, %v1648
        %v1692 = vpack.c.b16 %v1651, %v1650
        %v1693 = vpack.c.b16 %v1653, %v1652
        %v1694 = vpack.c.b16 %v1655, %v1654
        %v1695 = vpack.c.b16 %v1657, %v1656
        %v1696 = vpack.c.b16 %v1659, %v1658
        %v1697 = vpack.c.b16 %v1661, %v1660
        %v1698 = vpack.c.b16 %v1663, %v1662
        %v1699 = vpack.c.b16 %v1665, %v1664
        %v1700 = vpack.c.b16 %v1667, %v1666
        %v1701 = vpack.c.b16 %v1669, %v1668
        %v1702 = vpack.c.b16 %v1671, %v1670
        %v1703 = vpack.c.b16 %v1673, %v1672
        %v1704 = vpack.c.b16 %v1675, %v1674
        %v1705 = vpack.c.b16 %v1677, %v1676
        %v1706 = vpack.c.b16 %v1679, %v1678
        %v1707 = vpack.c.b16 %v1681, %v1680
        %v1708 = vpack.c.b16 %v1683, %v1682
        %v1709 = vpack.c.b16 %v1685, %v1684
        %1734 = vmatprep.subr.bf16.mxu0 0
        %1735 = vmatpush1.bf16.msra.mxu0 %v1686
        %1736 = vmatprep.subr.bf16.mxu0 0
        %1737 = vmatpush1.bf16.msra.mxu0 %v1687
        %1738 = vmatprep.subr.bf16.mxu0 0
        %1739 = vmatpush1.bf16.msra.mxu0 %v1688
        %1740 = vmatprep.subr.bf16.mxu0 0
        %1741 = vmatpush1.bf16.msra.mxu0 %v1689
        %1742 = vmatprep.subr.bf16.mxu0 0
        %1743 = vmatpush1.bf16.msra.mxu0 %v1690
        %1744 = vmatprep.subr.bf16.mxu0 0
        %1745 = vmatpush1.bf16.msra.mxu0 %v1691
        %1746 = vmatprep.subr.bf16.mxu0 0
        %1747 = vmatpush1.bf16.msra.mxu0 %v1692
        %1748 = vmatprep.subr.bf16.mxu0 0
        %1749 = vmatpush1.bf16.msra.mxu0 %v1693
        %1750 = vmatprep.subr.bf16.mxu0 0
        %1751 = vmatpush1.bf16.msra.mxu0 %v1694
        %1752 = vmatprep.subr.bf16.mxu0 0
        %1753 = vmatpush1.bf16.msra.mxu0 %v1695
        %1754 = vmatprep.subr.bf16.mxu0 0
        %1755 = vmatpush1.bf16.msra.mxu0 %v1696
        %1756 = vmatprep.subr.bf16.mxu0 0
        %1757 = vmatpush1.bf16.msra.mxu0 %v1697
        %1758 = vmatprep.subr.bf16.mxu0 0
        %1759 = vmatpush1.bf16.msra.mxu0 %v1698
        %1760 = vmatprep.subr.bf16.mxu0 0
        %1761 = vmatpush1.bf16.msra.mxu0 %v1699
        %1762 = vmatprep.subr.bf16.mxu0 0
        %1763 = vmatpush1.bf16.msra.mxu0 %v1700
        %1764 = vmatprep.subr.bf16.mxu0 0
        %1765 = vmatpush1.bf16.msra.mxu0 %v1701
        %1766 = vmatprep.mubr.bf16.mxu0 %v1533
        %1767 = vmatmul.mubr.bf16.gmra.mrb[0].mxu0 %v1532
        %v1768 = vpop.f32.mrb[0].mxu0
        %v1769 = vadd.f32 %v1588, %v1768
        %v1770 = vpop.f32.mrb[0].mxu0
        %v1771 = vpop.f32.mrb[0].mxu0
        %v1772 = vadd.f32 %v1588, %v1771
        %v1773 = vpop.f32.mrb[0].mxu0
        %1774 = vdwg.mxu0
        %1775 = vmatprep.subr.bf16.mxu0 0
        %1776 = vmatpush1.bf16.msra.mxu0 %v1702
        %1777 = vmatprep.subr.bf16.mxu0 0
        %1778 = vmatpush1.bf16.msra.mxu0 %v1703
        %1779 = vmatprep.subr.bf16.mxu0 0
        %1780 = vmatpush1.bf16.msra.mxu0 %v1704
        %1781 = vmatprep.subr.bf16.mxu0 0
        %1782 = vmatpush1.bf16.msra.mxu0 %v1705
        %1783 = vmatprep.subr.bf16.mxu0 0
        %1784 = vmatpush1.bf16.msra.mxu0 %v1706
        %1785 = vmatprep.subr.bf16.mxu0 0
        %1786 = vmatpush1.bf16.msra.mxu0 %v1707
        %1787 = vmatprep.subr.bf16.mxu0 0
        %1788 = vmatpush1.bf16.msra.mxu0 %v1708
        %1789 = vmatprep.subr.bf16.mxu0 0
        %1790 = vmatpush1.bf16.msra.mxu0 %v1709
        %1791 = vmatprep.subr.bf16.mxu0 0
        %1792 = vmatpush1.bf16.msra.mxu0 0
        %1793 = vmatprep.subr.bf16.mxu0 0
        %1794 = vmatpush1.bf16.msra.mxu0 0
        %1795 = vmatprep.subr.bf16.mxu0 0
        %1796 = vmatpush1.bf16.msra.mxu0 0
        %1797 = vmatprep.subr.bf16.mxu0 0
        %1798 = vmatpush1.bf16.msra.mxu0 0
        %1799 = vmatprep.subr.bf16.mxu0 0
        %1800 = vmatpush1.bf16.msra.mxu0 0
        %1801 = vmatprep.subr.bf16.mxu0 0
        %1802 = vmatpush1.bf16.msra.mxu0 0
        %1803 = vmatprep.subr.bf16.mxu0 0
        %1804 = vmatpush1.bf16.msra.mxu0 0
        %1805 = vmatprep.subr.bf16.mxu0 0
        %1806 = vmatpush1.bf16.msra.mxu0 0
        %1807 = vmatprep.mubr.bf16.mxu0 0
        %1808 = vmatmul.mubr.bf16.gmra.mrb[0].mxu0 %v1534
        %v1809 = vpop.f32.mrb[0].mxu0
        %v1810 = vadd.f32 %v1769, %v1809
        %v1811 = vpop.f32.mrb[0].mxu0
        %v1812 = vpop.f32.mrb[0].mxu0
        %v1813 = vadd.f32 %v1772, %v1812
        %v1814 = vpop.f32.mrb[0].mxu0
        %1815 = vdwg.mxu0
        %v1816 = vadd.f32 %v1218, %v1810
        %v1817 = vadd.f32 %v1219, %v1813
        %v1818 = vpack.c.bf16 %v1817, %v1816
        %v1819 = vld [vmem:[%s12] sm:$0xf]
        %v1820 = vld [vmem:[%s12 + $0x4] sm:$0xf]
        %v1821 = vld [vmem:[%s12 + $0x8] sm:$0xf]
        %v1822 = vld [vmem:[%s12 + $0xc] sm:$0xf]
        %v1823 = vld [vmem:[%s12 + $0x10] sm:$0xf]
        %v1824 = vld [vmem:[%s12 + $0x14] sm:$0xf]
        %v1825 = vld [vmem:[%s12 + $0x18] sm:$0xf]
        %v1826 = vld [vmem:[%s12 + $0x1c] sm:$0xf]
        %v1827 = vld [vmem:[%s12 + $0x20] sm:$0xf]
        %v1828 = vld [vmem:[%s12 + $0x24] sm:$0xf]
        %v1829 = vld [vmem:[%s12 + $0x28] sm:$0xf]
        %v1830 = vld [vmem:[%s12 + $0x2c] sm:$0xf]
        %v1831 = vld [vmem:[%s12 + $0x30] sm:$0xf]
        %v1832 = vld [vmem:[%s12 + $0x34] sm:$0xf]
        %v1833 = vld [vmem:[%s12 + $0x38] sm:$0xf]
        %v1834 = vld [vmem:[%s12 + $0x3c] sm:$0xf]
        %v1835 = vld [vmem:[%s13] sm:$0x1]
        %v1837 = vlaneseq
        %v1838 = vshrl.u32 %v1837, 7
        %v1839 = vsub.s32 0, %v1838
        %v1840 = vrot.slane %v1835, %v1839
        %v1858 = vunpack.c.l.b16 %v1819
        %v1859 = vunpack.c.l.b16 %v1820
        %v1860 = vunpack.c.l.b16 %v1821
        %v1861 = vunpack.c.l.b16 %v1822
        %v1862 = vunpack.c.l.b16 %v1823
        %v1863 = vunpack.c.l.b16 %v1824
        %v1864 = vunpack.c.l.b16 %v1825
        %v1865 = vunpack.c.l.b16 %v1826
        %v1866 = vunpack.c.l.b16 %v1827
        %v1867 = vunpack.c.l.b16 %v1828
        %v1868 = vunpack.c.l.b16 %v1829
        %v1869 = vunpack.c.l.b16 %v1830
        %v1870 = vunpack.c.l.b16 %v1831
        %v1871 = vunpack.c.l.b16 %v1832
        %v1872 = vunpack.c.l.b16 %v1833
        %v1873 = vunpack.c.l.b16 %v1834
        %v1874 = vpack.c.b16 %v1859, %v1858
        %v1875 = vpack.c.b16 %v1861, %v1860
        %v1876 = vpack.c.b16 %v1863, %v1862
        %v1877 = vpack.c.b16 %v1865, %v1864
        %v1878 = vpack.c.b16 %v1867, %v1866
        %v1879 = vpack.c.b16 %v1869, %v1868
        %v1880 = vpack.c.b16 %v1871, %v1870
        %v1881 = vpack.c.b16 %v1873, %v1872
        %1890 = vmatprep.subr.bf16.mxu0 0
        %1891 = vmatpush1.bf16.msra.mxu0 %v1874
        %1892 = vmatprep.subr.bf16.mxu0 0
        %1893 = vmatpush1.bf16.msra.mxu0 %v1875
        %1894 = vmatprep.subr.bf16.mxu0 0
        %1895 = vmatpush1.bf16.msra.mxu0 %v1876
        %1896 = vmatprep.subr.bf16.mxu0 0
        %1897 = vmatpush1.bf16.msra.mxu0 %v1877
        %1898 = vmatprep.subr.bf16.mxu0 0
        %1899 = vmatpush1.bf16.msra.mxu0 %v1878
        %1900 = vmatprep.subr.bf16.mxu0 0
        %1901 = vmatpush1.bf16.msra.mxu0 %v1879
        %1902 = vmatprep.subr.bf16.mxu0 0
        %1903 = vmatpush1.bf16.msra.mxu0 %v1880
        %1904 = vmatprep.subr.bf16.mxu0 0
        %1905 = vmatpush1.bf16.msra.mxu0 %v1881
        %1906 = vmatprep.subr.bf16.mxu0 0
        %1907 = vmatpush1.bf16.msra.mxu0 0
        %1908 = vmatprep.subr.bf16.mxu0 0
        %1909 = vmatpush1.bf16.msra.mxu0 0
        %1910 = vmatprep.subr.bf16.mxu0 0
        %1911 = vmatpush1.bf16.msra.mxu0 0
        %1912 = vmatprep.subr.bf16.mxu0 0
        %1913 = vmatpush1.bf16.msra.mxu0 0
        %1914 = vmatprep.subr.bf16.mxu0 0
        %1915 = vmatpush1.bf16.msra.mxu0 0
        %1916 = vmatprep.subr.bf16.mxu0 0
        %1917 = vmatpush1.bf16.msra.mxu0 0
        %1918 = vmatprep.subr.bf16.mxu0 0
        %1919 = vmatpush1.bf16.msra.mxu0 0
        %1920 = vmatprep.subr.bf16.mxu0 0
        %1921 = vmatpush1.bf16.msra.mxu0 0
        %1922 = vmatprep.mubr.bf16.mxu0 0
        %1923 = vmatmul.mubr.bf16.gmra.mrb[0].mxu0 %v1818
        %v1924 = vpop.f32.mrb[0].mxu0
        %v1925 = vadd.f32 %v1840, %v1924
        %v1926 = vpop.f32.mrb[0].mxu0
        %v1927 = vpop.f32.mrb[0].mxu0
        %v1928 = vadd.f32 %v1840, %v1927
        %v1929 = vpop.f32.mrb[0].mxu0
        %1930 = vdwg.mxu0
        %1931 = vst [vmem:[%s583] sm:$0xff] %v1925
        %1932 = vst [vmem:[%s583 + $0x8] sm:$0xff] %v1928
        %s1933 = sand.u32 %s348, 1
        %s1934 = scalar_lea.sflag [#allocation4], %s1933
        %s1935 = sand.u32 %s348, 1
        %s1936 = smul.addr %s1935, 16
        %s1937 = scalar_lea.vmem [#allocation13], %s1936
        // Predicated region
        $region101: #{tpu_custom_call.1} parent=75 // pred_check
          %p1938 = pneg %p358
        $region102: #{tpu_custom_call.1} parent=75 // pred_check_branch
          %1940 = sbr.rel (%p1938) target = $region104
        $region103: #{tpu_custom_call.1} parent=75 // pred_region
          %s1941 = smul.u32 2, %s36
          %s1943 = ssub.s32 256, 256
          %1944 = vsyncadd %s1934, %s1943
          %s1945 = smul.addr %s1941, 128
          %s1946 = scalar_lea.hbm %s14, %s1945
          %s1947 = sshll.u32 %s1937, 4
          %s1948 = int_to_ptr.vmem [resolvable:$true] %s1947
          %1953 = dma.vmem_to_hbm [thread:$0]  %s1948, 256, %s1946, %s1934, 128, 128, 8
        $region104: #{tpu_custom_call.1} parent=75 // pred_fallthru
          _
      $region76: #{tpu_custom_call.1} parent=5 // pred_fallthru
        _
      %p1954 = scmp.le.s32.totalorder 2, %s31
      // Predicated region
      $region105: #{tpu_custom_call.1} parent=5 // pred_check
        %p1955 = pneg %p1954
      $region106: #{tpu_custom_call.1} parent=5 // pred_check_branch
        %1957 = sbr.rel (%p1955) target = $region108
      $region107: #{tpu_custom_call.1} parent=5 // pred_region
        %s1958 = ssub.s32 %s31, 2
        // Predicated region
        $region109: #{tpu_custom_call.1} parent=107 // pred_check
          %p1959 = pneg %p364
        $region110: #{tpu_custom_call.1} parent=107 // pred_check_branch
          %1961 = sbr.rel (%p1959) target = $region112
        $region111: #{tpu_custom_call.1} parent=107 // pred_region
          %s1962 = sand.u32 %s349, 1
          %s1963 = scalar_lea.sflag [#allocation4], %s1962
          %s1964 = sand.u32 %s349, 1
          %s1965 = smul.addr %s1964, 16
          %s1966 = scalar_lea.vmem [#allocation13], %s1965
          %1967 = dma.done %s1963, 256
        $region112: #{tpu_custom_call.1} parent=107 // pred_fallthru
          _
      $region108: #{tpu_custom_call.1} parent=5 // pred_fallthru
        _
    $region6: #{tpu_custom_call.1} parent=1 // loop_footer
      %s35 = sadd.s32 1, %s31
    $region7: #{tpu_custom_call.1} parent=1 // loop_footer_branch
      %30 = sbr.rel target = $region3
    $region8: #{tpu_custom_call.1} parent=1 // loop_exit
      _
    %1968 = vsyncpa [#allocation3], 1
    %s1969 = scalar_lea.sflag [#allocation3], 1
    %1970 = vsyncpa %s1969, 1
    %1971 = vsyncpa [#allocation6], 1
    %s1972 = scalar_lea.sflag [#allocation6], 1
    %1973 = vsyncpa %s1972, 1
    %1974 = vsyncpa [#allocation9], 1
    %1975 = vsyncpa [#allocation12], 1
    %1976 = vsyncpa [#allocation4], 1
    %s1977 = scalar_lea.sflag [#allocation4], 1
    %1978 = vsyncpa %s1977, 1

</llo_original>
